<compile_context>
chip_gen: v6e
topology: v6e:2x2x1
jax: 0.10.0
libtpu: 0.0.40
codegen_flags: <defaults>
</compile_context>

<pallas_src>
import functools

import jax
import jax.numpy as jnp
from jax.experimental import pallas as pl
from jax.experimental.pallas import tpu as pltpu

CLASSES = ('A', 'B', 'C', 'D', 'E', 'F', 'G', 'H', 'I', 'J', 'K', 'L', 'M',
           'N', 'O', 'P', 'Q', 'R', 'S', 'T', 'U', 'V', 'W', 'X', 'Y', 'Z',
           'del', 'space', 'null')
NUM_CLASSES = len(CLASSES)          # 29

# Logical (PyTorch) dims and lane-padded kernel dims.
D_IN, D_H1, D_H2, D_H3 = 42, 400, 400, 100
D_H1_P, D_H2_P, D_H3_P, D_OUT_P = 512, 512, 128, 128


def _round_up(n, m):
    return ((n + m - 1) // m) * m


def _mlp_kernel(x_ref,
                w1_ref, b1_ref,
                w2_ref, b2_ref,
                w3_ref, b3_ref,
                w4_ref, b4_ref,
                o_ref):
    # x arrives f32; cast to bf16 in-kernel (cheap VPU work, saves a separate
    # wrapper-side HBM cast pass). Every jnp.dot accumulates in f32 on the MXU.
    h = x_ref[...].astype(jnp.bfloat16)
    h = jnp.dot(h, w1_ref[...], preferred_element_type=jnp.float32) + b1_ref[...]
    h = jnp.maximum(h, 0.0).astype(jnp.bfloat16)
    h = jnp.dot(h, w2_ref[...], preferred_element_type=jnp.float32) + b2_ref[...]
    h = jnp.maximum(h, 0.0).astype(jnp.bfloat16)
    h = jnp.dot(h, w3_ref[...], preferred_element_type=jnp.float32) + b3_ref[...]
    h = jnp.maximum(h, 0.0).astype(jnp.bfloat16)
    h = jnp.dot(h, w4_ref[...], preferred_element_type=jnp.float32) + b4_ref[...]
    o_ref[...] = h.astype(o_ref.dtype)           # fc4 (no activation), bf16 store


def init_params(key):
    """PyTorch nn.Linear-style init; weights stored transposed as (in, out), f32."""
    dims = [(D_IN, D_H1), (D_H1, D_H2), (D_H2, D_H3), (D_H3, NUM_CLASSES)]
    params = {}
    for i, (din, dout) in enumerate(dims, start=1):
        key, kw, kb = jax.random.split(key, 3)
        bound = 1.0 / jnp.sqrt(din)
        params[f"w{i}"] = jax.random.uniform(kw, (din, dout), jnp.float32, -bound, bound)
        params[f"b{i}"] = jax.random.uniform(kb, (1, dout), jnp.float32, -bound, bound)
    return params


def prepare_params(params):
    """Zero-pad all hidden/output dims to lane-friendly sizes and cast weights
    to bf16 (biases stay f32).  Padding is numerically exact: padded weight
    rows multiply zero activations and padded columns stay zero through ReLU."""
    pad_dims = {1: (D_IN, D_H1_P), 2: (D_H1_P, D_H2_P),
                3: (D_H2_P, D_H3_P), 4: (D_H3_P, D_OUT_P)}
    p = {}
    for i in (1, 2, 3, 4):
        w, b = params[f"w{i}"], params[f"b{i}"]
        rin, rout = pad_dims[i]
        w = jnp.pad(w, ((0, rin - w.shape[0]), (0, rout - w.shape[1])))
        b = jnp.pad(b, ((0, 0), (0, rout - b.shape[1])))
        p[f"w{i}"] = w.astype(jnp.bfloat16)
        p[f"b{i}"] = b.astype(jnp.float32)
    return p


def _pick_tile(B, tb):
    """Batch tile: big for throughput, >=2 grid steps for large B (keeps both
    v7x TensorCores busy), multiple of 16 sublanes for bf16 tiles."""
    if B <= 256:
        return _round_up(max(B, 16), 16)
    TB = min(tb, _round_up((B + 1) // 2, 256))
    return max(TB, 256)


@functools.partial(jax.jit, static_argnames=("tb", "pad_output"))
def smallnet_forward(x, prepared, tb=1024, pad_output=False):
    """x: (B, 42) float32. prepared: output of prepare_params().
    Returns (B, 29) f32 logits, or the padded (B_pad, 128) bf16 slab if
    pad_output=True (lets the consumer skip the extra slice pass)."""
    B = x.shape[0]
    TB = _pick_tile(B, tb)
    B_pad = _round_up(B, TB)

    x_p = x
    if B_pad != B:
        x_p = jnp.pad(x_p, ((0, B_pad - B), (0, 0)))

    # Constant index_map -> stays resident in VMEM across grid steps.
    resident = lambda arr: pl.BlockSpec(arr.shape, lambda i: (0, 0))

    vmem_limit = (32 << 20) if TB <= 1024 else (48 << 20)

    out = pl.pallas_call(
        _mlp_kernel,
        out_shape=jax.ShapeDtypeStruct((B_pad, D_OUT_P), jnp.bfloat16),
        grid=(B_pad // TB,),
        in_specs=[
            pl.BlockSpec((TB, D_IN), lambda i: (i, 0)),      # batch-tiled input (f32)
            resident(prepared["w1"]), resident(prepared["b1"]),
            resident(prepared["w2"]), resident(prepared["b2"]),
            resident(prepared["w3"]), resident(prepared["b3"]),
            resident(prepared["w4"]), resident(prepared["b4"]),
        ],
        out_specs=pl.BlockSpec((TB, D_OUT_P), lambda i: (i, 0)),
        compiler_params=pltpu.CompilerParams(
            dimension_semantics=("parallel",),   # shard batch tiles across TCs on v7x
            vmem_limit_bytes=vmem_limit,
        ),
    )(x_p,
      prepared["w1"], prepared["b1"],
      prepared["w2"], prepared["b2"],
      prepared["w3"], prepared["b3"],
      prepared["w4"], prepared["b4"])

    if pad_output:
        return out
    # Single fused slice+cast pass (whole wrapper is jitted).
    return out[:B, :NUM_CLASSES].astype(jnp.float32)


def _reference(x, prepared):
    """Pure-JAX reference with the same bf16/f32 mixed precision as the kernel."""
    h = x.astype(jnp.bfloat16)
    for i in (1, 2, 3):
        h = jnp.dot(h, prepared[f"w{i}"], preferred_element_type=jnp.float32) + prepared[f"b{i}"]
        h = jnp.maximum(h, 0.0).astype(jnp.bfloat16)
    h = jnp.dot(h, prepared["w4"], preferred_element_type=jnp.float32) + prepared["b4"]
    return h.astype(jnp.bfloat16)[:, :NUM_CLASSES].astype(jnp.float32)


if __name__ == "__main__":
    key = jax.random.PRNGKey(0)
    key, kx = jax.random.split(key)

    params = init_params(key)
    prepared = prepare_params(params)

    # Small batch (single-tile path) and a larger batch (multi-step grid path).
    for batch in (8, 600):
        x = jax.random.normal(jax.random.fold_in(kx, batch), (batch, D_IN), jnp.float32)
        out = jax.block_until_ready(smallnet_forward(x, prepared))
        ref = _reference(x, prepared)
        assert out.shape == (batch, NUM_CLASSES), out.shape
        assert jnp.allclose(out, ref, atol=2e-2, rtol=2e-2), \
            f"mismatch vs. pure-JAX reference at batch={batch}"

    print("KERNEL_OK")
</pallas_src>

<mosaic_0001>
module attributes {stable_mosaic.version = 11 : i64} {
  func.func @_mlp_kernel(%arg0: i32, %arg1: memref<16x42xf32, #tpu.memory_space<vmem>>, %arg2: memref<42x512xbf16, #tpu.memory_space<vmem>>, %arg3: memref<1x512xf32, #tpu.memory_space<vmem>>, %arg4: memref<512x512xbf16, #tpu.memory_space<vmem>>, %arg5: memref<1x512xf32, #tpu.memory_space<vmem>>, %arg6: memref<512x128xbf16, #tpu.memory_space<vmem>>, %arg7: memref<1x128xf32, #tpu.memory_space<vmem>>, %arg8: memref<128x128xbf16, #tpu.memory_space<vmem>>, %arg9: memref<1x128xf32, #tpu.memory_space<vmem>>, %arg10: memref<16x128xbf16, #tpu.memory_space<vmem>>) attributes {dimension_semantics = [#tpu.dimension_semantics<parallel>], iteration_bounds = array<i64: 1>, scalar_prefetch = 0 : i64, scratch_operands = 0 : i64, tpu.core_type = #tpu.core_type<tc>, window_params = [{transform_indices = @transform_0, window_bounds = array<i64: 16, 42>}, {pipeline_mode = #tpu.pipeline_mode<synchronous>, transform_indices = @transform_1, window_bounds = array<i64: 42, 512>}, {pipeline_mode = #tpu.pipeline_mode<synchronous>, transform_indices = @transform_2, window_bounds = array<i64: 1, 512>}, {pipeline_mode = #tpu.pipeline_mode<synchronous>, transform_indices = @transform_3, window_bounds = array<i64: 512, 512>}, {pipeline_mode = #tpu.pipeline_mode<synchronous>, transform_indices = @transform_4, window_bounds = array<i64: 1, 512>}, {pipeline_mode = #tpu.pipeline_mode<synchronous>, transform_indices = @transform_5, window_bounds = array<i64: 512, 128>}, {pipeline_mode = #tpu.pipeline_mode<synchronous>, transform_indices = @transform_6, window_bounds = array<i64: 1, 128>}, {pipeline_mode = #tpu.pipeline_mode<synchronous>, transform_indices = @transform_7, window_bounds = array<i64: 128, 128>}, {pipeline_mode = #tpu.pipeline_mode<synchronous>, transform_indices = @transform_8, window_bounds = array<i64: 1, 128>}, {transform_indices = @transform_9, window_bounds = array<i64: 16, 128>}]} {
    %c0 = arith.constant 0 : index
    %c0_0 = arith.constant 0 : index
    %0 = vector.load %arg1[%c0, %c0_0] : memref<16x42xf32, #tpu.memory_space<vmem>>, vector<16x42xf32>
    %1 = arith.truncf %0 : vector<16x42xf32> to vector<16x42xbf16>
    %c0_1 = arith.constant 0 : index
    %c0_2 = arith.constant 0 : index
    %2 = vector.load %arg2[%c0_1, %c0_2] : memref<42x512xbf16, #tpu.memory_space<vmem>>, vector<42x512xbf16>
    %cst = arith.constant dense<0.000000e+00> : vector<16x512xf32>
    %3 = tpu.matmul %1, %2, %cst {dimension_numbers = #tpu.dot_dimension_numbers<[1], [0], [0], [1], [0, 0, 1, 1], [], []>} : vector<16x42xbf16>, vector<42x512xbf16>, vector<16x512xf32> -> vector<16x512xf32>
    %c0_3 = arith.constant 0 : index
    %c0_4 = arith.constant 0 : index
    %4 = vector.load %arg3[%c0_3, %c0_4] : memref<1x512xf32, #tpu.memory_space<vmem>>, vector<1x512xf32>
    %5 = vector.broadcast %4 : vector<1x512xf32> to vector<16x512xf32>
    %6 = arith.addf %3, %5 : vector<16x512xf32>
    %cst_5 = arith.constant 0.000000e+00 : f32
    %7 = vector.broadcast %cst_5 : f32 to vector<16x512xf32>
    %8 = arith.maximumf %6, %7 : vector<16x512xf32>
    %9 = arith.truncf %8 : vector<16x512xf32> to vector<16x512xbf16>
    %c0_6 = arith.constant 0 : index
    %c0_7 = arith.constant 0 : index
    %10 = vector.load %arg4[%c0_6, %c0_7] : memref<512x512xbf16, #tpu.memory_space<vmem>>, vector<512x512xbf16>
    %cst_8 = arith.constant dense<0.000000e+00> : vector<16x512xf32>
    %11 = tpu.matmul %9, %10, %cst_8 {dimension_numbers = #tpu.dot_dimension_numbers<[1], [0], [0], [1], [0, 0, 1, 1], [], []>} : vector<16x512xbf16>, vector<512x512xbf16>, vector<16x512xf32> -> vector<16x512xf32>
    %c0_9 = arith.constant 0 : index
    %c0_10 = arith.constant 0 : index
    %12 = vector.load %arg5[%c0_9, %c0_10] : memref<1x512xf32, #tpu.memory_space<vmem>>, vector<1x512xf32>
    %13 = vector.broadcast %12 : vector<1x512xf32> to vector<16x512xf32>
    %14 = arith.addf %11, %13 : vector<16x512xf32>
    %cst_11 = arith.constant 0.000000e+00 : f32
    %15 = vector.broadcast %cst_11 : f32 to vector<16x512xf32>
    %16 = arith.maximumf %14, %15 : vector<16x512xf32>
    %17 = arith.truncf %16 : vector<16x512xf32> to vector<16x512xbf16>
    %c0_12 = arith.constant 0 : index
    %c0_13 = arith.constant 0 : index
    %18 = vector.load %arg6[%c0_12, %c0_13] : memref<512x128xbf16, #tpu.memory_space<vmem>>, vector<512x128xbf16>
    %cst_14 = arith.constant dense<0.000000e+00> : vector<16x128xf32>
    %19 = tpu.matmul %17, %18, %cst_14 {dimension_numbers = #tpu.dot_dimension_numbers<[1], [0], [0], [1], [0, 0, 1, 1], [], []>} : vector<16x512xbf16>, vector<512x128xbf16>, vector<16x128xf32> -> vector<16x128xf32>
    %c0_15 = arith.constant 0 : index
    %c0_16 = arith.constant 0 : index
    %20 = vector.load %arg7[%c0_15, %c0_16] : memref<1x128xf32, #tpu.memory_space<vmem>>, vector<1x128xf32>
    %21 = vector.broadcast %20 : vector<1x128xf32> to vector<16x128xf32>
    %22 = arith.addf %19, %21 : vector<16x128xf32>
    %cst_17 = arith.constant 0.000000e+00 : f32
    %23 = vector.broadcast %cst_17 : f32 to vector<16x128xf32>
    %24 = arith.maximumf %22, %23 : vector<16x128xf32>
    %25 = arith.truncf %24 : vector<16x128xf32> to vector<16x128xbf16>
    %c0_18 = arith.constant 0 : index
    %c0_19 = arith.constant 0 : index
    %26 = vector.load %arg8[%c0_18, %c0_19] : memref<128x128xbf16, #tpu.memory_space<vmem>>, vector<128x128xbf16>
    %cst_20 = arith.constant dense<0.000000e+00> : vector<16x128xf32>
    %27 = tpu.matmul %25, %26, %cst_20 {dimension_numbers = #tpu.dot_dimension_numbers<[1], [0], [0], [1], [0, 0, 1, 1], [], []>} : vector<16x128xbf16>, vector<128x128xbf16>, vector<16x128xf32> -> vector<16x128xf32>
    %c0_21 = arith.constant 0 : index
    %c0_22 = arith.constant 0 : index
    %28 = vector.load %arg9[%c0_21, %c0_22] : memref<1x128xf32, #tpu.memory_space<vmem>>, vector<1x128xf32>
    %29 = vector.broadcast %28 : vector<1x128xf32> to vector<16x128xf32>
    %30 = arith.addf %27, %29 : vector<16x128xf32>
    %31 = arith.truncf %30 : vector<16x128xf32> to vector<16x128xbf16>
    %c0_23 = arith.constant 0 : index
    %c0_24 = arith.constant 0 : index
    %32 = vector.load %arg10[%c0_23, %c0_24] : memref<16x128xbf16, #tpu.memory_space<vmem>>, vector<16x128xbf16>
    tpu.vector_store %arg10[%c0_23, %c0_24], %31 {strides = array<i32>} : memref<16x128xbf16, #tpu.memory_space<vmem>>, vector<16x128xbf16>,
    return
  }
  func.func @transform_0(%arg0: i32) -> (i32, i32) {
    %c0_i32 = arith.constant 0 : i32
    %c0_i32_0 = arith.constant 0 : i32
    return %arg0, %c0_i32 : i32, i32
  }
  func.func @transform_1(%arg0: i32) -> (i32, i32) {
    %c0_i32 = arith.constant 0 : i32
    %c0_i32_0 = arith.constant 0 : i32
    %c0_i32_1 = arith.constant 0 : i32
    return %c0_i32, %c0_i32_0 : i32, i32
  }
  func.func @transform_2(%arg0: i32) -> (i32, i32) {
    %c0_i32 = arith.constant 0 : i32
    %c0_i32_0 = arith.constant 0 : i32
    %c0_i32_1 = arith.constant 0 : i32
    return %c0_i32, %c0_i32_0 : i32, i32
  }
  func.func @transform_3(%arg0: i32) -> (i32, i32) {
    %c0_i32 = arith.constant 0 : i32
    %c0_i32_0 = arith.constant 0 : i32
    %c0_i32_1 = arith.constant 0 : i32
    return %c0_i32, %c0_i32_0 : i32, i32
  }
  func.func @transform_4(%arg0: i32) -> (i32, i32) {
    %c0_i32 = arith.constant 0 : i32
    %c0_i32_0 = arith.constant 0 : i32
    %c0_i32_1 = arith.constant 0 : i32
    return %c0_i32, %c0_i32_0 : i32, i32
  }
  func.func @transform_5(%arg0: i32) -> (i32, i32) {
    %c0_i32 = arith.constant 0 : i32
    %c0_i32_0 = arith.constant 0 : i32
    %c0_i32_1 = arith.constant 0 : i32
    return %c0_i32, %c0_i32_0 : i32, i32
  }
  func.func @transform_6(%arg0: i32) -> (i32, i32) {
    %c0_i32 = arith.constant 0 : i32
    %c0_i32_0 = arith.constant 0 : i32
    %c0_i32_1 = arith.constant 0 : i32
    return %c0_i32, %c0_i32_0 : i32, i32
  }
  func.func @transform_7(%arg0: i32) -> (i32, i32) {
    %c0_i32 = arith.constant 0 : i32
    %c0_i32_0 = arith.constant 0 : i32
    %c0_i32_1 = arith.constant 0 : i32
    return %c0_i32, %c0_i32_0 : i32, i32
  }
  func.func @transform_8(%arg0: i32) -> (i32, i32) {
    %c0_i32 = arith.constant 0 : i32
    %c0_i32_0 = arith.constant 0 : i32
    %c0_i32_1 = arith.constant 0 : i32
    return %c0_i32, %c0_i32_0 : i32, i32
  }
  func.func @transform_9(%arg0: i32) -> (i32, i32) {
    %c0_i32 = arith.constant 0 : i32
    %c0_i32_0 = arith.constant 0 : i32
    return %arg0, %c0_i32 : i32, i32
  }
}

</mosaic_0001>

<llo_original>
// kernel: smallnet_forward.1
$region0: #{smallnet_forward.1}
  #allocation0 [shape = 'u32[]', space=smem, size = 0x4, offset = 0x4, fixed_abs, tag = 'smem constant byte address 0x4 - core index']
  #allocation1 [shape = 'u32[144,128]{1,0:T(1,128)}', space=vmem, size = 0x12000, scoped, tag = 'internal scratch']
  %s0 = inlined_call_operand.vmem [shape: f32[16,42], index: 0, kind: input, shape index: {}]
  %s1 = inlined_call_operand.hbm [shape: bf16[42,512], index: 1, kind: input, shape index: {}]
  %s2 = inlined_call_operand.vmem [shape: f32[1,512], index: 2, kind: input, shape index: {}]
  %s3 = inlined_call_operand.hbm [shape: bf16[512,512], index: 3, kind: input, shape index: {}]
  %s4 = inlined_call_operand.vmem [shape: f32[1,512], index: 4, kind: input, shape index: {}]
  %s5 = inlined_call_operand.hbm [shape: bf16[512,128], index: 5, kind: input, shape index: {}]
  %s6 = inlined_call_operand.vmem [shape: f32[1,128], index: 6, kind: input, shape index: {}]
  %s7 = inlined_call_operand.hbm [shape: bf16[128,128], index: 7, kind: input, shape index: {}]
  %s8 = inlined_call_operand.vmem [shape: f32[1,128], index: 8, kind: input, shape index: {}]
  %s9 = inlined_call_operand.vmem [shape: bf16[16,128], index: 9, kind: output, shape index: {}]
  %s10 = sld [smem:[#allocation0]]
  $region62: #{smallnet_forward.1} parent=0
    _
  %s12 = ssub.s32 1, %s10
  %s13 = scalar_select 0, %s12, %s10
  $region1: #{smallnet_forward.1} parent=0
    #allocation2 [shape = 'u8[49152]{0}', space=vmem, size = 0xc000, scoped, tag = 'input window, operand 1, single buffered']
    #allocation3 [shape = 's32[1]{0}', space=sflag, size = 0x4, scoped, tag = 'scoped memory for smallnet_forward.1']
    #allocation4 [shape = 'u8[524288]{0}', space=vmem, size = 0x80000, scoped, tag = 'input window, operand 3, single buffered']
    #allocation5 [shape = 's32[1]{0}', space=sflag, size = 0x4, scoped, tag = 'scoped memory for smallnet_forward.1']
    #allocation6 [shape = 'u8[131072]{0}', space=vmem, size = 0x20000, scoped, tag = 'input window, operand 5, single buffered']
    #allocation7 [shape = 'u8[32768]{0}', space=vmem, size = 0x8000, scoped, tag = 'input window, operand 7, single buffered']
    #allocation8 [shape = 's32[1]{0}', space=sflag, size = 0x4, scoped, tag = 'scoped memory for smallnet_forward.1']
    %14 = vsyncpa [#allocation3], 0
    %15 = vsyncpa [#allocation5], 0
    %16 = vsyncpa [#allocation8], 0
    // Predicated region
    $region2: #{smallnet_forward.1} parent=1 // pred_check
      _
    $region3: #{smallnet_forward.1} parent=1 // pred_check_branch
      %18 = sbr.rel (0) target = $region5
    $region4: #{smallnet_forward.1} parent=1 // pred_region
      _
    $region5: #{smallnet_forward.1} parent=1 // pred_fallthru
      _
    // Predicated region
    $region6: #{smallnet_forward.1} parent=1 // pred_check
      _
    $region7: #{smallnet_forward.1} parent=1 // pred_check_branch
      %20 = sbr.rel (0) target = $region9
    $region8: #{smallnet_forward.1} parent=1 // pred_region
      %s22 = ssub.s32 1536, 1536
      %23 = vsyncadd [#allocation3], %s22
      %s24 = sshll.u32 [#allocation2], 4
      %s25 = int_to_ptr.vmem [resolvable:$true] %s24
      %30 = dma.hbm_to_vmem [thread:$0]  %s1, 1536, %s25, [#allocation3], 256, 256, 16
    $region9: #{smallnet_forward.1} parent=1 // pred_fallthru
      _
    // Predicated region
    $region10: #{smallnet_forward.1} parent=1 // pred_check
      _
    $region11: #{smallnet_forward.1} parent=1 // pred_check_branch
      %32 = sbr.rel (0) target = $region13
    $region12: #{smallnet_forward.1} parent=1 // pred_region
      _
    $region13: #{smallnet_forward.1} parent=1 // pred_fallthru
      _
    // Predicated region
    $region14: #{smallnet_forward.1} parent=1 // pred_check
      _
    $region15: #{smallnet_forward.1} parent=1 // pred_check_branch
      %34 = sbr.rel (0) target = $region17
    $region16: #{smallnet_forward.1} parent=1 // pred_region
      %s36 = ssub.s32 16384, 16384
      %37 = vsyncadd [#allocation5], %s36
      %s38 = sshll.u32 [#allocation4], 4
      %s39 = int_to_ptr.vmem [resolvable:$true] %s38
      %44 = dma.hbm_to_vmem [thread:$0]  %s3, 16384, %s39, [#allocation5], 256, 256, 16
    $region17: #{smallnet_forward.1} parent=1 // pred_fallthru
      _
    // Predicated region
    $region18: #{smallnet_forward.1} parent=1 // pred_check
      _
    $region19: #{smallnet_forward.1} parent=1 // pred_check_branch
      %46 = sbr.rel (0) target = $region21
    $region20: #{smallnet_forward.1} parent=1 // pred_region
      _
    $region21: #{smallnet_forward.1} parent=1 // pred_fallthru
      _
    // Predicated region
    $region22: #{smallnet_forward.1} parent=1 // pred_check
      _
    $region23: #{smallnet_forward.1} parent=1 // pred_check_branch
      %48 = sbr.rel (0) target = $region25
    $region24: #{smallnet_forward.1} parent=1 // pred_region
      %s50 = ssub.s32 4096, 4096
      %51 = vsyncadd [#allocation5], %s50
      %s52 = sshll.u32 [#allocation6], 4
      %s53 = int_to_ptr.vmem [resolvable:$true] %s52
      %58 = dma.hbm_to_vmem [thread:$0]  %s5, 4096, %s53, [#allocation5], 64, 64, 4
    $region25: #{smallnet_forward.1} parent=1 // pred_fallthru
      _
    // Predicated region
    $region26: #{smallnet_forward.1} parent=1 // pred_check
      _
    $region27: #{smallnet_forward.1} parent=1 // pred_check_branch
      %60 = sbr.rel (0) target = $region29
    $region28: #{smallnet_forward.1} parent=1 // pred_region
      _
    $region29: #{smallnet_forward.1} parent=1 // pred_fallthru
      _
    // Predicated region
    $region30: #{smallnet_forward.1} parent=1 // pred_check
      _
    $region31: #{smallnet_forward.1} parent=1 // pred_check_branch
      %62 = sbr.rel (0) target = $region33
    $region32: #{smallnet_forward.1} parent=1 // pred_region
      %s64 = ssub.s32 1024, 1024
      %65 = vsyncadd [#allocation8], %s64
      %s66 = sshll.u32 [#allocation7], 4
      %s67 = int_to_ptr.vmem [resolvable:$true] %s66
      %72 = dma.hbm_to_vmem [thread:$0]  %s7, 1024, %s67, [#allocation8], 64, 64, 4
    $region33: #{smallnet_forward.1} parent=1 // pred_fallthru
      _
    // Predicated region
    $region34: #{smallnet_forward.1} parent=1 // pred_check
      _
    $region35: #{smallnet_forward.1} parent=1 // pred_check_branch
      %74 = sbr.rel (0) target = $region37
    $region36: #{smallnet_forward.1} parent=1 // pred_region
      _
    $region37: #{smallnet_forward.1} parent=1 // pred_fallthru
      _
    // Predicated region
    $region38: #{smallnet_forward.1} parent=1 // pred_check
      _
    $region39: #{smallnet_forward.1} parent=1 // pred_check_branch
      %76 = sbr.rel (0) target = $region41
    $region40: #{smallnet_forward.1} parent=1 // pred_region
      %77 = dma.done [#allocation3], 1536
    $region41: #{smallnet_forward.1} parent=1 // pred_fallthru
      _
    // Predicated region
    $region42: #{smallnet_forward.1} parent=1 // pred_check
      _
    $region43: #{smallnet_forward.1} parent=1 // pred_check_branch
      %79 = sbr.rel (0) target = $region45
    $region44: #{smallnet_forward.1} parent=1 // pred_region
      %80 = dma.done [#allocation5], 16384
    $region45: #{smallnet_forward.1} parent=1 // pred_fallthru
      _
    // Predicated region
    $region46: #{smallnet_forward.1} parent=1 // pred_check
      _
    $region47: #{smallnet_forward.1} parent=1 // pred_check_branch
      %82 = sbr.rel (0) target = $region49
    $region48: #{smallnet_forward.1} parent=1 // pred_region
      %83 = dma.done [#allocation5], 4096
    $region49: #{smallnet_forward.1} parent=1 // pred_fallthru
      _
    // Predicated region
    $region50: #{smallnet_forward.1} parent=1 // pred_check
      _
    $region51: #{smallnet_forward.1} parent=1 // pred_check_branch
      %85 = sbr.rel (0) target = $region53
    $region52: #{smallnet_forward.1} parent=1 // pred_region
      %86 = dma.done [#allocation8], 1024
    $region53: #{smallnet_forward.1} parent=1 // pred_fallthru
      _
    %v88 = vld [vmem:[%s0] sm:$0xff]
    %v89 = vld [vmem:[%s0 + $0x8] sm:$0xff]
    %v90 = vpack.c.bf16 %v89, %v88
    %v91 = vld [vmem:[#allocation2] sm:$0xff]
    %v92 = vld [vmem:[#allocation2 + $0x8] sm:$0xff]
    %v93 = vld [vmem:[#allocation2 + $0x10] sm:$0xff]
    %v94 = vld [vmem:[#allocation2 + $0x18] sm:$0xff]
    %v95 = vld [vmem:[#allocation2 + $0x20] sm:$0xff]
    %v96 = vld [vmem:[#allocation2 + $0x28] sm:$0xff]
    %v97 = vld [vmem:[#allocation2 + $0x30] sm:$0xff]
    %v98 = vld [vmem:[#allocation2 + $0x38] sm:$0xff]
    %v99 = vld [vmem:[#allocation2 + $0x40] sm:$0xff]
    %v100 = vld [vmem:[#allocation2 + $0x48] sm:$0xff]
    %v101 = vld [vmem:[#allocation2 + $0x50] sm:$0x11]
    %v102 = vld [vmem:[#allocation2 + $0x58] sm:$0x11]
    %v103 = vld [vmem:[%s2] sm:$0xf]
    %v105 = vlaneseq
    %v106 = vshrl.u32 %v105, 7
    %v107 = vsub.s32 0, %v106
    %v108 = vrot.slane %v103, %v107
    %v109 = vlaneseq
    %v110 = vshrl.u32 %v109, 7
    %v111 = vsub.s32 1, %v110
    %v112 = vrot.slane %v103, %v111
    %v113 = vlaneseq
    %v114 = vshrl.u32 %v113, 7
    %v115 = vsub.s32 2, %v114
    %v116 = vrot.slane %v103, %v115
    %v117 = vlaneseq
    %v118 = vshrl.u32 %v117, 7
    %v119 = vsub.s32 3, %v118
    %v120 = vrot.slane %v103, %v119
    %v137 = vunpack.c.l.b16 %v91
    %v138 = vunpack.c.h.b16 %v91
    %v139 = vunpack.c.l.b16 %v92
    %v140 = vunpack.c.h.b16 %v92
    %v141 = vunpack.c.l.b16 %v93
    %v142 = vunpack.c.h.b16 %v93
    %v143 = vunpack.c.l.b16 %v94
    %v144 = vunpack.c.h.b16 %v94
    %v145 = vunpack.c.l.b16 %v95
    %v146 = vunpack.c.h.b16 %v95
    %v147 = vunpack.c.l.b16 %v96
    %v148 = vunpack.c.h.b16 %v96
    %v149 = vunpack.c.l.b16 %v97
    %v150 = vunpack.c.h.b16 %v97
    %v151 = vunpack.c.l.b16 %v98
    %v152 = vunpack.c.h.b16 %v98
    %v153 = vunpack.c.l.b16 %v99
    %v154 = vunpack.c.h.b16 %v99
    %v155 = vunpack.c.l.b16 %v100
    %v156 = vunpack.c.h.b16 %v100
    %v157 = vunpack.c.l.b16 %v101
    %v158 = vunpack.c.h.b16 %v101
    %v159 = vunpack.c.l.b16 %v102
    %v160 = vunpack.c.h.b16 %v102
    %v161 = vpack.c.b16 %v141, %v137
    %v162 = vpack.c.b16 %v142, %v138
    %v163 = vpack.c.b16 %v143, %v139
    %v164 = vpack.c.b16 %v144, %v140
    %v165 = vpack.c.b16 %v149, %v145
    %v166 = vpack.c.b16 %v150, %v146
    %v167 = vpack.c.b16 %v151, %v147
    %v168 = vpack.c.b16 %v152, %v148
    %v169 = vpack.c.b16 %v157, %v153
    %v170 = vpack.c.b16 %v158, %v154
    %v171 = vpack.c.b16 %v159, %v155
    %v172 = vpack.c.b16 %v160, %v156
    %vm181 = vcmask 343040
    %v183 = vsel %vm181, %v90, 0
    %vm185 = vcmask 1044480
    %v187 = vsel %vm185, %v169, 0
    %v190 = vsel %vm185, %v170, 0
    %v193 = vsel %vm185, %v171, 0
    %v196 = vsel %vm185, %v172, 0
    %198 = vmatprep.subr.bf16.mxu0 0
    %199 = vmatpush1.bf16.msra.mxu0 0
    %200 = vmatprep.subr.bf16.mxu0 0
    %201 = vmatpush1.bf16.msra.mxu0 0
    %202 = vmatprep.subr.bf16.mxu0 0
    %203 = vmatpush1.bf16.msra.mxu0 0
    %204 = vmatprep.subr.bf16.mxu0 0
    %205 = vmatpush1.bf16.msra.mxu0 0
    %206 = vmatprep.subr.bf16.mxu0 0
    %207 = vmatpush1.bf16.msra.mxu0 0
    %208 = vmatprep.subr.bf16.mxu0 %v190
    %209 = vmatpush1.bf16.msra.mxu0 %v187
    %210 = vmatprep.subr.bf16.mxu0 %v166
    %211 = vmatpush1.bf16.msra.mxu0 %v165
    %212 = vmatprep.subr.bf16.mxu0 %v162
    %213 = vmatpush1.bf16.msra.mxu0 %v161
    %214 = vmatprep.subr.bf16.mxu0 0
    %215 = vmatpush2.bf16.msra.mxu0 0
    %216 = vmatprep.subr.bf16.mxu0 0
    %217 = vmatpush2.bf16.msra.mxu0 0
    %218 = vmatprep.subr.bf16.mxu0 0
    %219 = vmatpush2.bf16.msra.mxu0 0
    %220 = vmatprep.subr.bf16.mxu0 0
    %221 = vmatpush2.bf16.msra.mxu0 0
    %222 = vmatprep.subr.bf16.mxu0 0
    %223 = vmatpush2.bf16.msra.mxu0 0
    %224 = vmatprep.subr.bf16.mxu0 0
    %225 = vmatpush2.bf16.msra.mxu0 0
    %226 = vmatprep.subr.bf16.mxu0 0
    %227 = vmatpush2.bf16.msra.mxu0 0
    %228 = vmatprep.subr.bf16.mxu0 0
    %229 = vmatpush2.bf16.msra.mxu0 0
    %230 = vmatprep.mubr.bf16.mxu0 0
    %231 = vmatmul.mubr.bf16.gmra.mxu0 %v183
    %v232 = vpop.f32.mrf.mxu0
    %v233 = vadd.f32 %v108, %v232
    %v234 = vpop.f32.mrf.mxu0
    %v235 = vadd.f32 %v112, %v234
    %v236 = vpop.f32.mrf.mxu0
    %v237 = vadd.f32 %v108, %v236
    %v238 = vpop.f32.mrf.mxu0
    %v239 = vadd.f32 %v112, %v238
    %240 = vdwg.mxu0
    %241 = vmatprep.subr.bf16.mxu0 0
    %242 = vmatpush1.bf16.msra.mxu0 0
    %243 = vmatprep.subr.bf16.mxu0 0
    %244 = vmatpush1.bf16.msra.mxu0 0
    %245 = vmatprep.subr.bf16.mxu0 0
    %246 = vmatpush1.bf16.msra.mxu0 0
    %247 = vmatprep.subr.bf16.mxu0 0
    %248 = vmatpush1.bf16.msra.mxu0 0
    %249 = vmatprep.subr.bf16.mxu0 0
    %250 = vmatpush1.bf16.msra.mxu0 0
    %251 = vmatprep.subr.bf16.mxu0 %v196
    %252 = vmatpush1.bf16.msra.mxu0 %v193
    %253 = vmatprep.subr.bf16.mxu0 %v168
    %254 = vmatpush1.bf16.msra.mxu0 %v167
    %255 = vmatprep.subr.bf16.mxu0 %v164
    %256 = vmatpush1.bf16.msra.mxu0 %v163
    %257 = vmatprep.subr.bf16.mxu0 0
    %258 = vmatpush2.bf16.msra.mxu0 0
    %259 = vmatprep.subr.bf16.mxu0 0
    %260 = vmatpush2.bf16.msra.mxu0 0
    %261 = vmatprep.subr.bf16.mxu0 0
    %262 = vmatpush2.bf16.msra.mxu0 0
    %263 = vmatprep.subr.bf16.mxu0 0
    %264 = vmatpush2.bf16.msra.mxu0 0
    %265 = vmatprep.subr.bf16.mxu0 0
    %266 = vmatpush2.bf16.msra.mxu0 0
    %267 = vmatprep.subr.bf16.mxu0 0
    %268 = vmatpush2.bf16.msra.mxu0 0
    %269 = vmatprep.subr.bf16.mxu0 0
    %270 = vmatpush2.bf16.msra.mxu0 0
    %271 = vmatprep.subr.bf16.mxu0 0
    %272 = vmatpush2.bf16.msra.mxu0 0
    %273 = vmatprep.mubr.bf16.mxu0 0
    %274 = vmatmul.mubr.bf16.gmra.mxu0 %v183
    %v275 = vpop.f32.mrf.mxu0
    %v276 = vadd.f32 %v116, %v275
    %v277 = vpop.f32.mrf.mxu0
    %v278 = vadd.f32 %v120, %v277
    %v279 = vpop.f32.mrf.mxu0
    %v280 = vadd.f32 %v116, %v279
    %v281 = vpop.f32.mrf.mxu0
    %v282 = vadd.f32 %v120, %v281
    %283 = vdwg.mxu0
    %v284 = vmax.f32 %v233, 0.0
    %v285 = vmax.f32 %v235, 0.0
    %v286 = vmax.f32 %v276, 0.0
    %v287 = vmax.f32 %v278, 0.0
    %v288 = vmax.f32 %v237, 0.0
    %v289 = vmax.f32 %v239, 0.0
    %v290 = vmax.f32 %v280, 0.0
    %v291 = vmax.f32 %v282, 0.0
    %v292 = vpack.c.bf16 %v288, %v284
    %v293 = vpack.c.bf16 %v289, %v285
    %v294 = vpack.c.bf16 %v290, %v286
    %v295 = vpack.c.bf16 %v291, %v287
    %v296 = vld [vmem:[#allocation4] sm:$0xff]
    %v297 = vld [vmem:[#allocation4 + $0x8] sm:$0xff]
    %v298 = vld [vmem:[#allocation4 + $0x10] sm:$0xff]
    %v299 = vld [vmem:[#allocation4 + $0x18] sm:$0xff]
    %v300 = vld [vmem:[#allocation4 + $0x20] sm:$0xff]
    %v301 = vld [vmem:[#allocation4 + $0x28] sm:$0xff]
    %v302 = vld [vmem:[#allocation4 + $0x30] sm:$0xff]
    %v303 = vld [vmem:[#allocation4 + $0x38] sm:$0xff]
    %v304 = vld [vmem:[#allocation4 + $0x40] sm:$0xff]
    %v305 = vld [vmem:[#allocation4 + $0x48] sm:$0xff]
    %v306 = vld [vmem:[#allocation4 + $0x50] sm:$0xff]
    %v307 = vld [vmem:[#allocation4 + $0x58] sm:$0xff]
    %v308 = vld [vmem:[#allocation4 + $0x60] sm:$0xff]
    %v309 = vld [vmem:[#allocation4 + $0x68] sm:$0xff]
    %v310 = vld [vmem:[#allocation4 + $0x70] sm:$0xff]
    %v311 = vld [vmem:[#allocation4 + $0x78] sm:$0xff]
    %v312 = vld [vmem:[#allocation4 + $0x80] sm:$0xff]
    %v313 = vld [vmem:[#allocation4 + $0x88] sm:$0xff]
    %v314 = vld [vmem:[#allocation4 + $0x90] sm:$0xff]
    %v315 = vld [vmem:[#allocation4 + $0x98] sm:$0xff]
    %v316 = vld [vmem:[#allocation4 + $0xa0] sm:$0xff]
    %v317 = vld [vmem:[#allocation4 + $0xa8] sm:$0xff]
    %v318 = vld [vmem:[#allocation4 + $0xb0] sm:$0xff]
    %v319 = vld [vmem:[#allocation4 + $0xb8] sm:$0xff]
    %v320 = vld [vmem:[#allocation4 + $0xc0] sm:$0xff]
    %v321 = vld [vmem:[#allocation4 + $0xc8] sm:$0xff]
    %v322 = vld [vmem:[#allocation4 + $0xd0] sm:$0xff]
    %v323 = vld [vmem:[#allocation4 + $0xd8] sm:$0xff]
    %v324 = vld [vmem:[#allocation4 + $0xe0] sm:$0xff]
    %v325 = vld [vmem:[#allocation4 + $0xe8] sm:$0xff]
    %v326 = vld [vmem:[#allocation4 + $0xf0] sm:$0xff]
    %v327 = vld [vmem:[#allocation4 + $0xf8] sm:$0xff]
    %v328 = vld [vmem:[#allocation4 + $0x100] sm:$0xff]
    %v329 = vld [vmem:[#allocation4 + $0x108] sm:$0xff]
    %v330 = vld [vmem:[#allocation4 + $0x110] sm:$0xff]
    %v331 = vld [vmem:[#allocation4 + $0x118] sm:$0xff]
    %v332 = vld [vmem:[#allocation4 + $0x120] sm:$0xff]
    %v333 = vld [vmem:[#allocation4 + $0x128] sm:$0xff]
    %v334 = vld [vmem:[#allocation4 + $0x130] sm:$0xff]
    %v335 = vld [vmem:[#allocation4 + $0x138] sm:$0xff]
    %v336 = vld [vmem:[#allocation4 + $0x140] sm:$0xff]
    %v337 = vld [vmem:[#allocation4 + $0x148] sm:$0xff]
    %v338 = vld [vmem:[#allocation4 + $0x150] sm:$0xff]
    %v339 = vld [vmem:[#allocation4 + $0x158] sm:$0xff]
    %v340 = vld [vmem:[#allocation4 + $0x160] sm:$0xff]
    %v341 = vld [vmem:[#allocation4 + $0x168] sm:$0xff]
    %v342 = vld [vmem:[#allocation4 + $0x170] sm:$0xff]
    %v343 = vld [vmem:[#allocation4 + $0x178] sm:$0xff]
    %v344 = vld [vmem:[#allocation4 + $0x180] sm:$0xff]
    %v345 = vld [vmem:[#allocation4 + $0x188] sm:$0xff]
    %v346 = vld [vmem:[#allocation4 + $0x190] sm:$0xff]
    %v347 = vld [vmem:[#allocation4 + $0x198] sm:$0xff]
    %v348 = vld [vmem:[#allocation4 + $0x1a0] sm:$0xff]
    %v349 = vld [vmem:[#allocation4 + $0x1a8] sm:$0xff]
    %v350 = vld [vmem:[#allocation4 + $0x1b0] sm:$0xff]
    %v351 = vld [vmem:[#allocation4 + $0x1b8] sm:$0xff]
    %v352 = vld [vmem:[#allocation4 + $0x1c0] sm:$0xff]
    %v353 = vld [vmem:[#allocation4 + $0x1c8] sm:$0xff]
    %v354 = vld [vmem:[#allocation4 + $0x1d0] sm:$0xff]
    %v355 = vld [vmem:[#allocation4 + $0x1d8] sm:$0xff]
    %v356 = vld [vmem:[#allocation4 + $0x1e0] sm:$0xff]
    %v357 = vld [vmem:[#allocation4 + $0x1e8] sm:$0xff]
    %v358 = vld [vmem:[#allocation4 + $0x1f0] sm:$0xff]
    %v359 = vld [vmem:[#allocation4 + $0x1f8] sm:$0xff]
    %v360 = vld [vmem:[#allocation4 + $0x200] sm:$0xff]
    %v361 = vld [vmem:[#allocation4 + $0x208] sm:$0xff]
    %v362 = vld [vmem:[#allocation4 + $0x210] sm:$0xff]
    %v363 = vld [vmem:[#allocation4 + $0x218] sm:$0xff]
    %v364 = vld [vmem:[#allocation4 + $0x220] sm:$0xff]
    %v365 = vld [vmem:[#allocation4 + $0x228] sm:$0xff]
    %v366 = vld [vmem:[#allocation4 + $0x230] sm:$0xff]
    %v367 = vld [vmem:[#allocation4 + $0x238] sm:$0xff]
    %v368 = vld [vmem:[#allocation4 + $0x240] sm:$0xff]
    %v369 = vld [vmem:[#allocation4 + $0x248] sm:$0xff]
    %v370 = vld [vmem:[#allocation4 + $0x250] sm:$0xff]
    %v371 = vld [vmem:[#allocation4 + $0x258] sm:$0xff]
    %v372 = vld [vmem:[#allocation4 + $0x260] sm:$0xff]
    %v373 = vld [vmem:[#allocation4 + $0x268] sm:$0xff]
    %v374 = vld [vmem:[#allocation4 + $0x270] sm:$0xff]
    %v375 = vld [vmem:[#allocation4 + $0x278] sm:$0xff]
    %v376 = vld [vmem:[#allocation4 + $0x280] sm:$0xff]
    %v377 = vld [vmem:[#allocation4 + $0x288] sm:$0xff]
    %v378 = vld [vmem:[#allocation4 + $0x290] sm:$0xff]
    %v379 = vld [vmem:[#allocation4 + $0x298] sm:$0xff]
    %v380 = vld [vmem:[#allocation4 + $0x2a0] sm:$0xff]
    %v381 = vld [vmem:[#allocation4 + $0x2a8] sm:$0xff]
    %v382 = vld [vmem:[#allocation4 + $0x2b0] sm:$0xff]
    %v383 = vld [vmem:[#allocation4 + $0x2b8] sm:$0xff]
    %v384 = vld [vmem:[#allocation4 + $0x2c0] sm:$0xff]
    %v385 = vld [vmem:[#allocation4 + $0x2c8] sm:$0xff]
    %v386 = vld [vmem:[#allocation4 + $0x2d0] sm:$0xff]
    %v387 = vld [vmem:[#allocation4 + $0x2d8] sm:$0xff]
    %v388 = vld [vmem:[#allocation4 + $0x2e0] sm:$0xff]
    %v389 = vld [vmem:[#allocation4 + $0x2e8] sm:$0xff]
    %v390 = vld [vmem:[#allocation4 + $0x2f0] sm:$0xff]
    %v391 = vld [vmem:[#allocation4 + $0x2f8] sm:$0xff]
    %v392 = vld [vmem:[#allocation4 + $0x300] sm:$0xff]
    %v393 = vld [vmem:[#allocation4 + $0x308] sm:$0xff]
    %v394 = vld [vmem:[#allocation4 + $0x310] sm:$0xff]
    %v395 = vld [vmem:[#allocation4 + $0x318] sm:$0xff]
    %v396 = vld [vmem:[#allocation4 + $0x320] sm:$0xff]
    %v397 = vld [vmem:[#allocation4 + $0x328] sm:$0xff]
    %v398 = vld [vmem:[#allocation4 + $0x330] sm:$0xff]
    %v399 = vld [vmem:[#allocation4 + $0x338] sm:$0xff]
    %v400 = vld [vmem:[#allocation4 + $0x340] sm:$0xff]
    %v401 = vld [vmem:[#allocation4 + $0x348] sm:$0xff]
    %v402 = vld [vmem:[#allocation4 + $0x350] sm:$0xff]
    %v403 = vld [vmem:[#allocation4 + $0x358] sm:$0xff]
    %v404 = vld [vmem:[#allocation4 + $0x360] sm:$0xff]
    %v405 = vld [vmem:[#allocation4 + $0x368] sm:$0xff]
    %v406 = vld [vmem:[#allocation4 + $0x370] sm:$0xff]
    %v407 = vld [vmem:[#allocation4 + $0x378] sm:$0xff]
    %v408 = vld [vmem:[#allocation4 + $0x380] sm:$0xff]
    %v409 = vld [vmem:[#allocation4 + $0x388] sm:$0xff]
    %v410 = vld [vmem:[#allocation4 + $0x390] sm:$0xff]
    %v411 = vld [vmem:[#allocation4 + $0x398] sm:$0xff]
    %v412 = vld [vmem:[#allocation4 + $0x3a0] sm:$0xff]
    %v413 = vld [vmem:[#allocation4 + $0x3a8] sm:$0xff]
    %v414 = vld [vmem:[#allocation4 + $0x3b0] sm:$0xff]
    %v415 = vld [vmem:[#allocation4 + $0x3b8] sm:$0xff]
    %v416 = vld [vmem:[#allocation4 + $0x3c0] sm:$0xff]
    %v417 = vld [vmem:[#allocation4 + $0x3c8] sm:$0xff]
    %v418 = vld [vmem:[#allocation4 + $0x3d0] sm:$0xff]
    %v419 = vld [vmem:[#allocation4 + $0x3d8] sm:$0xff]
    %v420 = vld [vmem:[#allocation4 + $0x3e0] sm:$0xff]
    %v421 = vld [vmem:[#allocation4 + $0x3e8] sm:$0xff]
    %v422 = vld [vmem:[#allocation4 + $0x3f0] sm:$0xff]
    %v423 = vld [vmem:[#allocation4 + $0x3f8] sm:$0xff]
    %v424 = vld [vmem:[%s4] sm:$0xf]
    %v426 = vlaneseq
    %v427 = vshrl.u32 %v426, 7
    %v428 = vsub.s32 0, %v427
    %v429 = vrot.slane %v424, %v428
    %v430 = vlaneseq
    %v431 = vshrl.u32 %v430, 7
    %v432 = vsub.s32 1, %v431
    %v433 = vrot.slane %v424, %v432
    %v434 = vlaneseq
    %v435 = vshrl.u32 %v434, 7
    %v436 = vsub.s32 2, %v435
    %v437 = vrot.slane %v424, %v436
    %v438 = vlaneseq
    %v439 = vshrl.u32 %v438, 7
    %v440 = vsub.s32 3, %v439
    %v441 = vrot.slane %v424, %v440
    %v574 = vunpack.c.l.b16 %v296
    %v575 = vunpack.c.h.b16 %v296
    %v576 = vunpack.c.l.b16 %v297
    %v577 = vunpack.c.h.b16 %v297
    %v578 = vunpack.c.l.b16 %v298
    %v579 = vunpack.c.h.b16 %v298
    %v580 = vunpack.c.l.b16 %v299
    %v581 = vunpack.c.h.b16 %v299
    %v582 = vunpack.c.l.b16 %v300
    %v583 = vunpack.c.h.b16 %v300
    %v584 = vunpack.c.l.b16 %v301
    %v585 = vunpack.c.h.b16 %v301
    %v586 = vunpack.c.l.b16 %v302
    %v587 = vunpack.c.h.b16 %v302
    %v588 = vunpack.c.l.b16 %v303
    %v589 = vunpack.c.h.b16 %v303
    %v590 = vunpack.c.l.b16 %v304
    %v591 = vunpack.c.h.b16 %v304
    %v592 = vunpack.c.l.b16 %v305
    %v593 = vunpack.c.h.b16 %v305
    %v594 = vunpack.c.l.b16 %v306
    %v595 = vunpack.c.h.b16 %v306
    %v596 = vunpack.c.l.b16 %v307
    %v597 = vunpack.c.h.b16 %v307
    %v598 = vunpack.c.l.b16 %v308
    %v599 = vunpack.c.h.b16 %v308
    %v600 = vunpack.c.l.b16 %v309
    %v601 = vunpack.c.h.b16 %v309
    %v602 = vunpack.c.l.b16 %v310
    %v603 = vunpack.c.h.b16 %v310
    %v604 = vunpack.c.l.b16 %v311
    %v605 = vunpack.c.h.b16 %v311
    %v606 = vunpack.c.l.b16 %v312
    %v607 = vunpack.c.h.b16 %v312
    %v608 = vunpack.c.l.b16 %v313
    %v609 = vunpack.c.h.b16 %v313
    %v610 = vunpack.c.l.b16 %v314
    %v611 = vunpack.c.h.b16 %v314
    %v612 = vunpack.c.l.b16 %v315
    %v613 = vunpack.c.h.b16 %v315
    %v614 = vunpack.c.l.b16 %v316
    %v615 = vunpack.c.h.b16 %v316
    %v616 = vunpack.c.l.b16 %v317
    %v617 = vunpack.c.h.b16 %v317
    %v618 = vunpack.c.l.b16 %v318
    %v619 = vunpack.c.h.b16 %v318
    %v620 = vunpack.c.l.b16 %v319
    %v621 = vunpack.c.h.b16 %v319
    %v622 = vunpack.c.l.b16 %v320
    %v623 = vunpack.c.h.b16 %v320
    %v624 = vunpack.c.l.b16 %v321
    %v625 = vunpack.c.h.b16 %v321
    %v626 = vunpack.c.l.b16 %v322
    %v627 = vunpack.c.h.b16 %v322
    %v628 = vunpack.c.l.b16 %v323
    %v629 = vunpack.c.h.b16 %v323
    %v630 = vunpack.c.l.b16 %v324
    %v631 = vunpack.c.h.b16 %v324
    %v632 = vunpack.c.l.b16 %v325
    %v633 = vunpack.c.h.b16 %v325
    %v634 = vunpack.c.l.b16 %v326
    %v635 = vunpack.c.h.b16 %v326
    %v636 = vunpack.c.l.b16 %v327
    %v637 = vunpack.c.h.b16 %v327
    %v638 = vunpack.c.l.b16 %v328
    %v639 = vunpack.c.h.b16 %v328
    %v640 = vunpack.c.l.b16 %v329
    %v641 = vunpack.c.h.b16 %v329
    %v642 = vunpack.c.l.b16 %v330
    %v643 = vunpack.c.h.b16 %v330
    %v644 = vunpack.c.l.b16 %v331
    %v645 = vunpack.c.h.b16 %v331
    %v646 = vunpack.c.l.b16 %v332
    %v647 = vunpack.c.h.b16 %v332
    %v648 = vunpack.c.l.b16 %v333
    %v649 = vunpack.c.h.b16 %v333
    %v650 = vunpack.c.l.b16 %v334
    %v651 = vunpack.c.h.b16 %v334
    %v652 = vunpack.c.l.b16 %v335
    %v653 = vunpack.c.h.b16 %v335
    %v654 = vunpack.c.l.b16 %v336
    %v655 = vunpack.c.h.b16 %v336
    %v656 = vunpack.c.l.b16 %v337
    %v657 = vunpack.c.h.b16 %v337
    %v658 = vunpack.c.l.b16 %v338
    %v659 = vunpack.c.h.b16 %v338
    %v660 = vunpack.c.l.b16 %v339
    %v661 = vunpack.c.h.b16 %v339
    %v662 = vunpack.c.l.b16 %v340
    %v663 = vunpack.c.h.b16 %v340
    %v664 = vunpack.c.l.b16 %v341
    %v665 = vunpack.c.h.b16 %v341
    %v666 = vunpack.c.l.b16 %v342
    %v667 = vunpack.c.h.b16 %v342
    %v668 = vunpack.c.l.b16 %v343
    %v669 = vunpack.c.h.b16 %v343
    %v670 = vunpack.c.l.b16 %v344
    %v671 = vunpack.c.h.b16 %v344
    %v672 = vunpack.c.l.b16 %v345
    %v673 = vunpack.c.h.b16 %v345
    %v674 = vunpack.c.l.b16 %v346
    %v675 = vunpack.c.h.b16 %v346
    %v676 = vunpack.c.l.b16 %v347
    %v677 = vunpack.c.h.b16 %v347
    %v678 = vunpack.c.l.b16 %v348
    %v679 = vunpack.c.h.b16 %v348
    %v680 = vunpack.c.l.b16 %v349
    %v681 = vunpack.c.h.b16 %v349
    %v682 = vunpack.c.l.b16 %v350
    %v683 = vunpack.c.h.b16 %v350
    %v684 = vunpack.c.l.b16 %v351
    %v685 = vunpack.c.h.b16 %v351
    %v686 = vunpack.c.l.b16 %v352
    %v687 = vunpack.c.h.b16 %v352
    %v688 = vunpack.c.l.b16 %v353
    %v689 = vunpack.c.h.b16 %v353
    %v690 = vunpack.c.l.b16 %v354
    %v691 = vunpack.c.h.b16 %v354
    %v692 = vunpack.c.l.b16 %v355
    %v693 = vunpack.c.h.b16 %v355
    %v694 = vunpack.c.l.b16 %v356
    %v695 = vunpack.c.h.b16 %v356
    %v696 = vunpack.c.l.b16 %v357
    %v697 = vunpack.c.h.b16 %v357
    %v698 = vunpack.c.l.b16 %v358
    %v699 = vunpack.c.h.b16 %v358
    %v700 = vunpack.c.l.b16 %v359
    %v701 = vunpack.c.h.b16 %v359
    %v702 = vunpack.c.l.b16 %v360
    %v703 = vunpack.c.h.b16 %v360
    %v704 = vunpack.c.l.b16 %v361
    %v705 = vunpack.c.h.b16 %v361
    %v706 = vunpack.c.l.b16 %v362
    %v707 = vunpack.c.h.b16 %v362
    %v708 = vunpack.c.l.b16 %v363
    %v709 = vunpack.c.h.b16 %v363
    %v710 = vunpack.c.l.b16 %v364
    %v711 = vunpack.c.h.b16 %v364
    %v712 = vunpack.c.l.b16 %v365
    %v713 = vunpack.c.h.b16 %v365
    %v714 = vunpack.c.l.b16 %v366
    %v715 = vunpack.c.h.b16 %v366
    %v716 = vunpack.c.l.b16 %v367
    %v717 = vunpack.c.h.b16 %v367
    %v718 = vunpack.c.l.b16 %v368
    %v719 = vunpack.c.h.b16 %v368
    %v720 = vunpack.c.l.b16 %v369
    %v721 = vunpack.c.h.b16 %v369
    %v722 = vunpack.c.l.b16 %v370
    %v723 = vunpack.c.h.b16 %v370
    %v724 = vunpack.c.l.b16 %v371
    %v725 = vunpack.c.h.b16 %v371
    %v726 = vunpack.c.l.b16 %v372
    %v727 = vunpack.c.h.b16 %v372
    %v728 = vunpack.c.l.b16 %v373
    %v729 = vunpack.c.h.b16 %v373
    %v730 = vunpack.c.l.b16 %v374
    %v731 = vunpack.c.h.b16 %v374
    %v732 = vunpack.c.l.b16 %v375
    %v733 = vunpack.c.h.b16 %v375
    %v734 = vunpack.c.l.b16 %v376
    %v735 = vunpack.c.h.b16 %v376
    %v736 = vunpack.c.l.b16 %v377
    %v737 = vunpack.c.h.b16 %v377
    %v738 = vunpack.c.l.b16 %v378
    %v739 = vunpack.c.h.b16 %v378
    %v740 = vunpack.c.l.b16 %v379
    %v741 = vunpack.c.h.b16 %v379
    %v742 = vunpack.c.l.b16 %v380
    %v743 = vunpack.c.h.b16 %v380
    %v744 = vunpack.c.l.b16 %v381
    %v745 = vunpack.c.h.b16 %v381
    %v746 = vunpack.c.l.b16 %v382
    %v747 = vunpack.c.h.b16 %v382
    %v748 = vunpack.c.l.b16 %v383
    %v749 = vunpack.c.h.b16 %v383
    %v750 = vunpack.c.l.b16 %v384
    %v751 = vunpack.c.h.b16 %v384
    %v752 = vunpack.c.l.b16 %v385
    %v753 = vunpack.c.h.b16 %v385
    %v754 = vunpack.c.l.b16 %v386
    %v755 = vunpack.c.h.b16 %v386
    %v756 = vunpack.c.l.b16 %v387
    %v757 = vunpack.c.h.b16 %v387
    %v758 = vunpack.c.l.b16 %v388
    %v759 = vunpack.c.h.b16 %v388
    %v760 = vunpack.c.l.b16 %v389
    %v761 = vunpack.c.h.b16 %v389
    %v762 = vunpack.c.l.b16 %v390
    %v763 = vunpack.c.h.b16 %v390
    %v764 = vunpack.c.l.b16 %v391
    %v765 = vunpack.c.h.b16 %v391
    %v766 = vunpack.c.l.b16 %v392
    %v767 = vunpack.c.h.b16 %v392
    %v768 = vunpack.c.l.b16 %v393
    %v769 = vunpack.c.h.b16 %v393
    %v770 = vunpack.c.l.b16 %v394
    %v771 = vunpack.c.h.b16 %v394
    %v772 = vunpack.c.l.b16 %v395
    %v773 = vunpack.c.h.b16 %v395
    %v774 = vunpack.c.l.b16 %v396
    %v775 = vunpack.c.h.b16 %v396
    %v776 = vunpack.c.l.b16 %v397
    %v777 = vunpack.c.h.b16 %v397
    %v778 = vunpack.c.l.b16 %v398
    %v779 = vunpack.c.h.b16 %v398
    %v780 = vunpack.c.l.b16 %v399
    %v781 = vunpack.c.h.b16 %v399
    %v782 = vunpack.c.l.b16 %v400
    %v783 = vunpack.c.h.b16 %v400
    %v784 = vunpack.c.l.b16 %v401
    %v785 = vunpack.c.h.b16 %v401
    %v786 = vunpack.c.l.b16 %v402
    %v787 = vunpack.c.h.b16 %v402
    %v788 = vunpack.c.l.b16 %v403
    %v789 = vunpack.c.h.b16 %v403
    %v790 = vunpack.c.l.b16 %v404
    %v791 = vunpack.c.h.b16 %v404
    %v792 = vunpack.c.l.b16 %v405
    %v793 = vunpack.c.h.b16 %v405
    %v794 = vunpack.c.l.b16 %v406
    %v795 = vunpack.c.h.b16 %v406
    %v796 = vunpack.c.l.b16 %v407
    %v797 = vunpack.c.h.b16 %v407
    %v798 = vunpack.c.l.b16 %v408
    %v799 = vunpack.c.h.b16 %v408
    %v800 = vunpack.c.l.b16 %v409
    %v801 = vunpack.c.h.b16 %v409
    %v802 = vunpack.c.l.b16 %v410
    %v803 = vunpack.c.h.b16 %v410
    %v804 = vunpack.c.l.b16 %v411
    %v805 = vunpack.c.h.b16 %v411
    %v806 = vunpack.c.l.b16 %v412
    %v807 = vunpack.c.h.b16 %v412
    %v808 = vunpack.c.l.b16 %v413
    %v809 = vunpack.c.h.b16 %v413
    %v810 = vunpack.c.l.b16 %v414
    %v811 = vunpack.c.h.b16 %v414
    %v812 = vunpack.c.l.b16 %v415
    %v813 = vunpack.c.h.b16 %v415
    %v814 = vunpack.c.l.b16 %v416
    %v815 = vunpack.c.h.b16 %v416
    %v816 = vunpack.c.l.b16 %v417
    %v817 = vunpack.c.h.b16 %v417
    %v818 = vunpack.c.l.b16 %v418
    %v819 = vunpack.c.h.b16 %v418
    %v820 = vunpack.c.l.b16 %v419
    %v821 = vunpack.c.h.b16 %v419
    %v822 = vunpack.c.l.b16 %v420
    %v823 = vunpack.c.h.b16 %v420
    %v824 = vunpack.c.l.b16 %v421
    %v825 = vunpack.c.h.b16 %v421
    %v826 = vunpack.c.l.b16 %v422
    %v827 = vunpack.c.h.b16 %v422
    %v828 = vunpack.c.l.b16 %v423
    %v829 = vunpack.c.h.b16 %v423
    %v830 = vpack.c.b16 %v578, %v574
    %v831 = vpack.c.b16 %v579, %v575
    %v832 = vpack.c.b16 %v580, %v576
    %v833 = vpack.c.b16 %v581, %v577
    %v834 = vpack.c.b16 %v586, %v582
    %v835 = vpack.c.b16 %v587, %v583
    %v836 = vpack.c.b16 %v588, %v584
    %v837 = vpack.c.b16 %v589, %v585
    %v838 = vpack.c.b16 %v594, %v590
    %v839 = vpack.c.b16 %v595, %v591
    %v840 = vpack.c.b16 %v596, %v592
    %v841 = vpack.c.b16 %v597, %v593
    %v842 = vpack.c.b16 %v602, %v598
    %v843 = vpack.c.b16 %v603, %v599
    %v844 = vpack.c.b16 %v604, %v600
    %v845 = vpack.c.b16 %v605, %v601
    %v846 = vpack.c.b16 %v610, %v606
    %v847 = vpack.c.b16 %v611, %v607
    %v848 = vpack.c.b16 %v612, %v608
    %v849 = vpack.c.b16 %v613, %v609
    %v850 = vpack.c.b16 %v618, %v614
    %v851 = vpack.c.b16 %v619, %v615
    %v852 = vpack.c.b16 %v620, %v616
    %v853 = vpack.c.b16 %v621, %v617
    %v854 = vpack.c.b16 %v626, %v622
    %v855 = vpack.c.b16 %v627, %v623
    %v856 = vpack.c.b16 %v628, %v624
    %v857 = vpack.c.b16 %v629, %v625
    %v858 = vpack.c.b16 %v634, %v630
    %v859 = vpack.c.b16 %v635, %v631
    %v860 = vpack.c.b16 %v636, %v632
    %v861 = vpack.c.b16 %v637, %v633
    %v862 = vpack.c.b16 %v642, %v638
    %v863 = vpack.c.b16 %v643, %v639
    %v864 = vpack.c.b16 %v644, %v640
    %v865 = vpack.c.b16 %v645, %v641
    %v866 = vpack.c.b16 %v650, %v646
    %v867 = vpack.c.b16 %v651, %v647
    %v868 = vpack.c.b16 %v652, %v648
    %v869 = vpack.c.b16 %v653, %v649
    %v870 = vpack.c.b16 %v658, %v654
    %v871 = vpack.c.b16 %v659, %v655
    %v872 = vpack.c.b16 %v660, %v656
    %v873 = vpack.c.b16 %v661, %v657
    %v874 = vpack.c.b16 %v666, %v662
    %v875 = vpack.c.b16 %v667, %v663
    %v876 = vpack.c.b16 %v668, %v664
    %v877 = vpack.c.b16 %v669, %v665
    %v878 = vpack.c.b16 %v674, %v670
    %v879 = vpack.c.b16 %v675, %v671
    %v880 = vpack.c.b16 %v676, %v672
    %v881 = vpack.c.b16 %v677, %v673
    %v882 = vpack.c.b16 %v682, %v678
    %v883 = vpack.c.b16 %v683, %v679
    %v884 = vpack.c.b16 %v684, %v680
    %v885 = vpack.c.b16 %v685, %v681
    %v886 = vpack.c.b16 %v690, %v686
    %v887 = vpack.c.b16 %v691, %v687
    %v888 = vpack.c.b16 %v692, %v688
    %v889 = vpack.c.b16 %v693, %v689
    %v890 = vpack.c.b16 %v698, %v694
    %v891 = vpack.c.b16 %v699, %v695
    %v892 = vpack.c.b16 %v700, %v696
    %v893 = vpack.c.b16 %v701, %v697
    %v894 = vpack.c.b16 %v706, %v702
    %v895 = vpack.c.b16 %v707, %v703
    %v896 = vpack.c.b16 %v708, %v704
    %v897 = vpack.c.b16 %v709, %v705
    %v898 = vpack.c.b16 %v714, %v710
    %v899 = vpack.c.b16 %v715, %v711
    %v900 = vpack.c.b16 %v716, %v712
    %v901 = vpack.c.b16 %v717, %v713
    %v902 = vpack.c.b16 %v722, %v718
    %v903 = vpack.c.b16 %v723, %v719
    %v904 = vpack.c.b16 %v724, %v720
    %v905 = vpack.c.b16 %v725, %v721
    %v906 = vpack.c.b16 %v730, %v726
    %v907 = vpack.c.b16 %v731, %v727
    %v908 = vpack.c.b16 %v732, %v728
    %v909 = vpack.c.b16 %v733, %v729
    %v910 = vpack.c.b16 %v738, %v734
    %v911 = vpack.c.b16 %v739, %v735
    %v912 = vpack.c.b16 %v740, %v736
    %v913 = vpack.c.b16 %v741, %v737
    %v914 = vpack.c.b16 %v746, %v742
    %v915 = vpack.c.b16 %v747, %v743
    %v916 = vpack.c.b16 %v748, %v744
    %v917 = vpack.c.b16 %v749, %v745
    %v918 = vpack.c.b16 %v754, %v750
    %v919 = vpack.c.b16 %v755, %v751
    %v920 = vpack.c.b16 %v756, %v752
    %v921 = vpack.c.b16 %v757, %v753
    %v922 = vpack.c.b16 %v762, %v758
    %v923 = vpack.c.b16 %v763, %v759
    %v924 = vpack.c.b16 %v764, %v760
    %v925 = vpack.c.b16 %v765, %v761
    %v926 = vpack.c.b16 %v770, %v766
    %v927 = vpack.c.b16 %v771, %v767
    %v928 = vpack.c.b16 %v772, %v768
    %v929 = vpack.c.b16 %v773, %v769
    %v930 = vpack.c.b16 %v778, %v774
    %v931 = vpack.c.b16 %v779, %v775
    %v932 = vpack.c.b16 %v780, %v776
    %v933 = vpack.c.b16 %v781, %v777
    %v934 = vpack.c.b16 %v786, %v782
    %v935 = vpack.c.b16 %v787, %v783
    %v936 = vpack.c.b16 %v788, %v784
    %v937 = vpack.c.b16 %v789, %v785
    %v938 = vpack.c.b16 %v794, %v790
    %v939 = vpack.c.b16 %v795, %v791
    %v940 = vpack.c.b16 %v796, %v792
    %v941 = vpack.c.b16 %v797, %v793
    %v942 = vpack.c.b16 %v802, %v798
    %v943 = vpack.c.b16 %v803, %v799
    %v944 = vpack.c.b16 %v804, %v800
    %v945 = vpack.c.b16 %v805, %v801
    %v946 = vpack.c.b16 %v810, %v806
    %v947 = vpack.c.b16 %v811, %v807
    %v948 = vpack.c.b16 %v812, %v808
    %v949 = vpack.c.b16 %v813, %v809
    %v950 = vpack.c.b16 %v818, %v814
    %v951 = vpack.c.b16 %v819, %v815
    %v952 = vpack.c.b16 %v820, %v816
    %v953 = vpack.c.b16 %v821, %v817
    %v954 = vpack.c.b16 %v826, %v822
    %v955 = vpack.c.b16 %v827, %v823
    %v956 = vpack.c.b16 %v828, %v824
    %v957 = vpack.c.b16 %v829, %v825
    %1086 = vmatprep.subr.bf16.mxu0 %v859
    %1087 = vmatpush1.bf16.msra.mxu0 %v858
    %1088 = vmatprep.subr.bf16.mxu0 %v855
    %1089 = vmatpush1.bf16.msra.mxu0 %v854
    %1090 = vmatprep.subr.bf16.mxu0 %v851
    %1091 = vmatpush1.bf16.msra.mxu0 %v850
    %1092 = vmatprep.subr.bf16.mxu0 %v847
    %1093 = vmatpush1.bf16.msra.mxu0 %v846
    %1094 = vmatprep.subr.bf16.mxu0 %v843
    %1095 = vmatpush1.bf16.msra.mxu0 %v842
    %1096 = vmatprep.subr.bf16.mxu0 %v839
    %1097 = vmatpush1.bf16.msra.mxu0 %v838
    %1098 = vmatprep.subr.bf16.mxu0 %v835
    %1099 = vmatpush1.bf16.msra.mxu0 %v834
    %1100 = vmatprep.subr.bf16.mxu0 %v831
    %1101 = vmatpush1.bf16.msra.mxu0 %v830
    %1102 = vmatprep.subr.bf16.mxu0 %v891
    %1103 = vmatpush2.bf16.msra.mxu0 %v890
    %1104 = vmatprep.subr.bf16.mxu0 %v887
    %1105 = vmatpush2.bf16.msra.mxu0 %v886
    %1106 = vmatprep.subr.bf16.mxu0 %v883
    %1107 = vmatpush2.bf16.msra.mxu0 %v882
    %1108 = vmatprep.subr.bf16.mxu0 %v879
    %1109 = vmatpush2.bf16.msra.mxu0 %v878
    %1110 = vmatprep.subr.bf16.mxu0 %v875
    %1111 = vmatpush2.bf16.msra.mxu0 %v874
    %1112 = vmatprep.subr.bf16.mxu0 %v871
    %1113 = vmatpush2.bf16.msra.mxu0 %v870
    %1114 = vmatprep.subr.bf16.mxu0 %v867
    %1115 = vmatpush2.bf16.msra.mxu0 %v866
    %1116 = vmatprep.subr.bf16.mxu0 %v863
    %1117 = vmatpush2.bf16.msra.mxu0 %v862
    %1118 = vmatprep.mubr.bf16.mxu0 %v293
    %1119 = vmatmul.mubr.bf16.gmra.mxu0 %v292
    %v1120 = vpop.f32.mrf.mxu0
    %v1121 = vadd.f32 %v429, %v1120
    %v1122 = vpop.f32.mrf.mxu0
    %v1123 = vadd.f32 %v433, %v1122
    %v1124 = vpop.f32.mrf.mxu0
    %v1125 = vadd.f32 %v429, %v1124
    %v1126 = vpop.f32.mrf.mxu0
    %v1127 = vadd.f32 %v433, %v1126
    %1128 = vdwg.mxu0
    %1129 = vmatprep.subr.bf16.mxu0 %v923
    %1130 = vmatpush1.bf16.msra.mxu0 %v922
    %1131 = vmatprep.subr.bf16.mxu0 %v919
    %1132 = vmatpush1.bf16.msra.mxu0 %v918
    %1133 = vmatprep.subr.bf16.mxu0 %v915
    %1134 = vmatpush1.bf16.msra.mxu0 %v914
    %1135 = vmatprep.subr.bf16.mxu0 %v911
    %1136 = vmatpush1.bf16.msra.mxu0 %v910
    %1137 = vmatprep.subr.bf16.mxu0 %v907
    %1138 = vmatpush1.bf16.msra.mxu0 %v906
    %1139 = vmatprep.subr.bf16.mxu0 %v903
    %1140 = vmatpush1.bf16.msra.mxu0 %v902
    %1141 = vmatprep.subr.bf16.mxu0 %v899
    %1142 = vmatpush1.bf16.msra.mxu0 %v898
    %1143 = vmatprep.subr.bf16.mxu0 %v895
    %1144 = vmatpush1.bf16.msra.mxu0 %v894
    %1145 = vmatprep.subr.bf16.mxu0 %v955
    %1146 = vmatpush2.bf16.msra.mxu0 %v954
    %1147 = vmatprep.subr.bf16.mxu0 %v951
    %1148 = vmatpush2.bf16.msra.mxu0 %v950
    %1149 = vmatprep.subr.bf16.mxu0 %v947
    %1150 = vmatpush2.bf16.msra.mxu0 %v946
    %1151 = vmatprep.subr.bf16.mxu0 %v943
    %1152 = vmatpush2.bf16.msra.mxu0 %v942
    %1153 = vmatprep.subr.bf16.mxu0 %v939
    %1154 = vmatpush2.bf16.msra.mxu0 %v938
    %1155 = vmatprep.subr.bf16.mxu0 %v935
    %1156 = vmatpush2.bf16.msra.mxu0 %v934
    %1157 = vmatprep.subr.bf16.mxu0 %v931
    %1158 = vmatpush2.bf16.msra.mxu0 %v930
    %1159 = vmatprep.subr.bf16.mxu0 %v927
    %1160 = vmatpush2.bf16.msra.mxu0 %v926
    %1161 = vmatprep.mubr.bf16.mxu0 %v295
    %1162 = vmatmul.mubr.bf16.gmra.mxu0 %v294
    %v1163 = vpop.f32.mrf.mxu0
    %v1164 = vadd.f32 %v1121, %v1163
    %v1165 = vpop.f32.mrf.mxu0
    %v1166 = vadd.f32 %v1123, %v1165
    %v1167 = vpop.f32.mrf.mxu0
    %v1168 = vadd.f32 %v1125, %v1167
    %v1169 = vpop.f32.mrf.mxu0
    %v1170 = vadd.f32 %v1127, %v1169
    %1171 = vdwg.mxu0
    %1172 = vmatprep.subr.bf16.mxu0 %v861
    %1173 = vmatpush1.bf16.msra.mxu0 %v860
    %1174 = vmatprep.subr.bf16.mxu0 %v857
    %1175 = vmatpush1.bf16.msra.mxu0 %v856
    %1176 = vmatprep.subr.bf16.mxu0 %v853
    %1177 = vmatpush1.bf16.msra.mxu0 %v852
    %1178 = vmatprep.subr.bf16.mxu0 %v849
    %1179 = vmatpush1.bf16.msra.mxu0 %v848
    %1180 = vmatprep.subr.bf16.mxu0 %v845
    %1181 = vmatpush1.bf16.msra.mxu0 %v844
    %1182 = vmatprep.subr.bf16.mxu0 %v841
    %1183 = vmatpush1.bf16.msra.mxu0 %v840
    %1184 = vmatprep.subr.bf16.mxu0 %v837
    %1185 = vmatpush1.bf16.msra.mxu0 %v836
    %1186 = vmatprep.subr.bf16.mxu0 %v833
    %1187 = vmatpush1.bf16.msra.mxu0 %v832
    %1188 = vmatprep.subr.bf16.mxu0 %v893
    %1189 = vmatpush2.bf16.msra.mxu0 %v892
    %1190 = vmatprep.subr.bf16.mxu0 %v889
    %1191 = vmatpush2.bf16.msra.mxu0 %v888
    %1192 = vmatprep.subr.bf16.mxu0 %v885
    %1193 = vmatpush2.bf16.msra.mxu0 %v884
    %1194 = vmatprep.subr.bf16.mxu0 %v881
    %1195 = vmatpush2.bf16.msra.mxu0 %v880
    %1196 = vmatprep.subr.bf16.mxu0 %v877
    %1197 = vmatpush2.bf16.msra.mxu0 %v876
    %1198 = vmatprep.subr.bf16.mxu0 %v873
    %1199 = vmatpush2.bf16.msra.mxu0 %v872
    %1200 = vmatprep.subr.bf16.mxu0 %v869
    %1201 = vmatpush2.bf16.msra.mxu0 %v868
    %1202 = vmatprep.subr.bf16.mxu0 %v865
    %1203 = vmatpush2.bf16.msra.mxu0 %v864
    %1204 = vmatprep.mubr.bf16.mxu0 %v293
    %1205 = vmatmul.mubr.bf16.gmra.mxu0 %v292
    %v1206 = vpop.f32.mrf.mxu0
    %v1207 = vadd.f32 %v437, %v1206
    %v1208 = vpop.f32.mrf.mxu0
    %v1209 = vadd.f32 %v441, %v1208
    %v1210 = vpop.f32.mrf.mxu0
    %v1211 = vadd.f32 %v437, %v1210
    %v1212 = vpop.f32.mrf.mxu0
    %v1213 = vadd.f32 %v441, %v1212
    %1214 = vdwg.mxu0
    %1215 = vmatprep.subr.bf16.mxu0 %v925
    %1216 = vmatpush1.bf16.msra.mxu0 %v924
    %1217 = vmatprep.subr.bf16.mxu0 %v921
    %1218 = vmatpush1.bf16.msra.mxu0 %v920
    %1219 = vmatprep.subr.bf16.mxu0 %v917
    %1220 = vmatpush1.bf16.msra.mxu0 %v916
    %1221 = vmatprep.subr.bf16.mxu0 %v913
    %1222 = vmatpush1.bf16.msra.mxu0 %v912
    %1223 = vmatprep.subr.bf16.mxu0 %v909
    %1224 = vmatpush1.bf16.msra.mxu0 %v908
    %1225 = vmatprep.subr.bf16.mxu0 %v905
    %1226 = vmatpush1.bf16.msra.mxu0 %v904
    %1227 = vmatprep.subr.bf16.mxu0 %v901
    %1228 = vmatpush1.bf16.msra.mxu0 %v900
    %1229 = vmatprep.subr.bf16.mxu0 %v897
    %1230 = vmatpush1.bf16.msra.mxu0 %v896
    %1231 = vmatprep.subr.bf16.mxu0 %v957
    %1232 = vmatpush2.bf16.msra.mxu0 %v956
    %1233 = vmatprep.subr.bf16.mxu0 %v953
    %1234 = vmatpush2.bf16.msra.mxu0 %v952
    %1235 = vmatprep.subr.bf16.mxu0 %v949
    %1236 = vmatpush2.bf16.msra.mxu0 %v948
    %1237 = vmatprep.subr.bf16.mxu0 %v945
    %1238 = vmatpush2.bf16.msra.mxu0 %v944
    %1239 = vmatprep.subr.bf16.mxu0 %v941
    %1240 = vmatpush2.bf16.msra.mxu0 %v940
    %1241 = vmatprep.subr.bf16.mxu0 %v937
    %1242 = vmatpush2.bf16.msra.mxu0 %v936
    %1243 = vmatprep.subr.bf16.mxu0 %v933
    %1244 = vmatpush2.bf16.msra.mxu0 %v932
    %1245 = vmatprep.subr.bf16.mxu0 %v929
    %1246 = vmatpush2.bf16.msra.mxu0 %v928
    %1247 = vmatprep.mubr.bf16.mxu0 %v295
    %1248 = vmatmul.mubr.bf16.gmra.mxu0 %v294
    %v1249 = vpop.f32.mrf.mxu0
    %v1250 = vadd.f32 %v1207, %v1249
    %v1251 = vpop.f32.mrf.mxu0
    %v1252 = vadd.f32 %v1209, %v1251
    %v1253 = vpop.f32.mrf.mxu0
    %v1254 = vadd.f32 %v1211, %v1253
    %v1255 = vpop.f32.mrf.mxu0
    %v1256 = vadd.f32 %v1213, %v1255
    %1257 = vdwg.mxu0
    %v1258 = vmax.f32 %v1164, 0.0
    %v1259 = vmax.f32 %v1166, 0.0
    %v1260 = vmax.f32 %v1250, 0.0
    %v1261 = vmax.f32 %v1252, 0.0
    %v1262 = vmax.f32 %v1168, 0.0
    %v1263 = vmax.f32 %v1170, 0.0
    %v1264 = vmax.f32 %v1254, 0.0
    %v1265 = vmax.f32 %v1256, 0.0
    %v1266 = vpack.c.bf16 %v1262, %v1258
    %v1267 = vpack.c.bf16 %v1263, %v1259
    %v1268 = vpack.c.bf16 %v1264, %v1260
    %v1269 = vpack.c.bf16 %v1265, %v1261
    %v1270 = vld [vmem:[#allocation6] sm:$0xf]
    %v1271 = vld [vmem:[#allocation6 + $0x4] sm:$0xf]
    %v1272 = vld [vmem:[#allocation6 + $0x8] sm:$0xf]
    %v1273 = vld [vmem:[#allocation6 + $0xc] sm:$0xf]
    %v1274 = vld [vmem:[#allocation6 + $0x10] sm:$0xf]
    %v1275 = vld [vmem:[#allocation6 + $0x14] sm:$0xf]
    %v1276 = vld [vmem:[#allocation6 + $0x18] sm:$0xf]
    %v1277 = vld [vmem:[#allocation6 + $0x1c] sm:$0xf]
    %v1278 = vld [vmem:[#allocation6 + $0x20] sm:$0xf]
    %v1279 = vld [vmem:[#allocation6 + $0x24] sm:$0xf]
    %v1280 = vld [vmem:[#allocation6 + $0x28] sm:$0xf]
    %v1281 = vld [vmem:[#allocation6 + $0x2c] sm:$0xf]
    %v1282 = vld [vmem:[#allocation6 + $0x30] sm:$0xf]
    %v1283 = vld [vmem:[#allocation6 + $0x34] sm:$0xf]
    %v1284 = vld [vmem:[#allocation6 + $0x38] sm:$0xf]
    %v1285 = vld [vmem:[#allocation6 + $0x3c] sm:$0xf]
    %v1286 = vld [vmem:[#allocation6 + $0x40] sm:$0xf]
    %v1287 = vld [vmem:[#allocation6 + $0x44] sm:$0xf]
    %v1288 = vld [vmem:[#allocation6 + $0x48] sm:$0xf]
    %v1289 = vld [vmem:[#allocation6 + $0x4c] sm:$0xf]
    %v1290 = vld [vmem:[#allocation6 + $0x50] sm:$0xf]
    %v1291 = vld [vmem:[#allocation6 + $0x54] sm:$0xf]
    %v1292 = vld [vmem:[#allocation6 + $0x58] sm:$0xf]
    %v1293 = vld [vmem:[#allocation6 + $0x5c] sm:$0xf]
    %v1294 = vld [vmem:[#allocation6 + $0x60] sm:$0xf]
    %v1295 = vld [vmem:[#allocation6 + $0x64] sm:$0xf]
    %v1296 = vld [vmem:[#allocation6 + $0x68] sm:$0xf]
    %v1297 = vld [vmem:[#allocation6 + $0x6c] sm:$0xf]
    %v1298 = vld [vmem:[#allocation6 + $0x70] sm:$0xf]
    %v1299 = vld [vmem:[#allocation6 + $0x74] sm:$0xf]
    %v1300 = vld [vmem:[#allocation6 + $0x78] sm:$0xf]
    %v1301 = vld [vmem:[#allocation6 + $0x7c] sm:$0xf]
    %v1302 = vld [vmem:[#allocation6 + $0x80] sm:$0xf]
    %v1303 = vld [vmem:[#allocation6 + $0x84] sm:$0xf]
    %v1304 = vld [vmem:[#allocation6 + $0x88] sm:$0xf]
    %v1305 = vld [vmem:[#allocation6 + $0x8c] sm:$0xf]
    %v1306 = vld [vmem:[#allocation6 + $0x90] sm:$0xf]
    %v1307 = vld [vmem:[#allocation6 + $0x94] sm:$0xf]
    %v1308 = vld [vmem:[#allocation6 + $0x98] sm:$0xf]
    %v1309 = vld [vmem:[#allocation6 + $0x9c] sm:$0xf]
    %v1310 = vld [vmem:[#allocation6 + $0xa0] sm:$0xf]
    %v1311 = vld [vmem:[#allocation6 + $0xa4] sm:$0xf]
    %v1312 = vld [vmem:[#allocation6 + $0xa8] sm:$0xf]
    %v1313 = vld [vmem:[#allocation6 + $0xac] sm:$0xf]
    %v1314 = vld [vmem:[#allocation6 + $0xb0] sm:$0xf]
    %v1315 = vld [vmem:[#allocation6 + $0xb4] sm:$0xf]
    %v1316 = vld [vmem:[#allocation6 + $0xb8] sm:$0xf]
    %v1317 = vld [vmem:[#allocation6 + $0xbc] sm:$0xf]
    %v1318 = vld [vmem:[#allocation6 + $0xc0] sm:$0xf]
    %v1319 = vld [vmem:[#allocation6 + $0xc4] sm:$0xf]
    %v1320 = vld [vmem:[#allocation6 + $0xc8] sm:$0xf]
    %v1321 = vld [vmem:[#allocation6 + $0xcc] sm:$0xf]
    %v1322 = vld [vmem:[#allocation6 + $0xd0] sm:$0xf]
    %v1323 = vld [vmem:[#allocation6 + $0xd4] sm:$0xf]
    %v1324 = vld [vmem:[#allocation6 + $0xd8] sm:$0xf]
    %v1325 = vld [vmem:[#allocation6 + $0xdc] sm:$0xf]
    %v1326 = vld [vmem:[#allocation6 + $0xe0] sm:$0xf]
    %v1327 = vld [vmem:[#allocation6 + $0xe4] sm:$0xf]
    %v1328 = vld [vmem:[#allocation6 + $0xe8] sm:$0xf]
    %v1329 = vld [vmem:[#allocation6 + $0xec] sm:$0xf]
    %v1330 = vld [vmem:[#allocation6 + $0xf0] sm:$0xf]
    %v1331 = vld [vmem:[#allocation6 + $0xf4] sm:$0xf]
    %v1332 = vld [vmem:[#allocation6 + $0xf8] sm:$0xf]
    %v1333 = vld [vmem:[#allocation6 + $0xfc] sm:$0xf]
    %v1334 = vld [vmem:[%s6] sm:$0x1]
    %v1336 = vlaneseq
    %v1337 = vshrl.u32 %v1336, 7
    %v1338 = vsub.s32 0, %v1337
    %v1339 = vrot.slane %v1334, %v1338
    %v1405 = vunpack.c.l.b16 %v1270
    %v1406 = vunpack.c.l.b16 %v1271
    %v1407 = vunpack.c.l.b16 %v1272
    %v1408 = vunpack.c.l.b16 %v1273
    %v1409 = vunpack.c.l.b16 %v1274
    %v1410 = vunpack.c.l.b16 %v1275
    %v1411 = vunpack.c.l.b16 %v1276
    %v1412 = vunpack.c.l.b16 %v1277
    %v1413 = vunpack.c.l.b16 %v1278
    %v1414 = vunpack.c.l.b16 %v1279
    %v1415 = vunpack.c.l.b16 %v1280
    %v1416 = vunpack.c.l.b16 %v1281
    %v1417 = vunpack.c.l.b16 %v1282
    %v1418 = vunpack.c.l.b16 %v1283
    %v1419 = vunpack.c.l.b16 %v1284
    %v1420 = vunpack.c.l.b16 %v1285
    %v1421 = vunpack.c.l.b16 %v1286
    %v1422 = vunpack.c.l.b16 %v1287
    %v1423 = vunpack.c.l.b16 %v1288
    %v1424 = vunpack.c.l.b16 %v1289
    %v1425 = vunpack.c.l.b16 %v1290
    %v1426 = vunpack.c.l.b16 %v1291
    %v1427 = vunpack.c.l.b16 %v1292
    %v1428 = vunpack.c.l.b16 %v1293
    %v1429 = vunpack.c.l.b16 %v1294
    %v1430 = vunpack.c.l.b16 %v1295
    %v1431 = vunpack.c.l.b16 %v1296
    %v1432 = vunpack.c.l.b16 %v1297
    %v1433 = vunpack.c.l.b16 %v1298
    %v1434 = vunpack.c.l.b16 %v1299
    %v1435 = vunpack.c.l.b16 %v1300
    %v1436 = vunpack.c.l.b16 %v1301
    %v1437 = vunpack.c.l.b16 %v1302
    %v1438 = vunpack.c.l.b16 %v1303
    %v1439 = vunpack.c.l.b16 %v1304
    %v1440 = vunpack.c.l.b16 %v1305
    %v1441 = vunpack.c.l.b16 %v1306
    %v1442 = vunpack.c.l.b16 %v1307
    %v1443 = vunpack.c.l.b16 %v1308
    %v1444 = vunpack.c.l.b16 %v1309
    %v1445 = vunpack.c.l.b16 %v1310
    %v1446 = vunpack.c.l.b16 %v1311
    %v1447 = vunpack.c.l.b16 %v1312
    %v1448 = vunpack.c.l.b16 %v1313
    %v1449 = vunpack.c.l.b16 %v1314
    %v1450 = vunpack.c.l.b16 %v1315
    %v1451 = vunpack.c.l.b16 %v1316
    %v1452 = vunpack.c.l.b16 %v1317
    %v1453 = vunpack.c.l.b16 %v1318
    %v1454 = vunpack.c.l.b16 %v1319
    %v1455 = vunpack.c.l.b16 %v1320
    %v1456 = vunpack.c.l.b16 %v1321
    %v1457 = vunpack.c.l.b16 %v1322
    %v1458 = vunpack.c.l.b16 %v1323
    %v1459 = vunpack.c.l.b16 %v1324
    %v1460 = vunpack.c.l.b16 %v1325
    %v1461 = vunpack.c.l.b16 %v1326
    %v1462 = vunpack.c.l.b16 %v1327
    %v1463 = vunpack.c.l.b16 %v1328
    %v1464 = vunpack.c.l.b16 %v1329
    %v1465 = vunpack.c.l.b16 %v1330
    %v1466 = vunpack.c.l.b16 %v1331
    %v1467 = vunpack.c.l.b16 %v1332
    %v1468 = vunpack.c.l.b16 %v1333
    %v1469 = vpack.c.b16 %v1406, %v1405
    %v1470 = vpack.c.b16 %v1408, %v1407
    %v1471 = vpack.c.b16 %v1410, %v1409
    %v1472 = vpack.c.b16 %v1412, %v1411
    %v1473 = vpack.c.b16 %v1414, %v1413
    %v1474 = vpack.c.b16 %v1416, %v1415
    %v1475 = vpack.c.b16 %v1418, %v1417
    %v1476 = vpack.c.b16 %v1420, %v1419
    %v1477 = vpack.c.b16 %v1422, %v1421
    %v1478 = vpack.c.b16 %v1424, %v1423
    %v1479 = vpack.c.b16 %v1426, %v1425
    %v1480 = vpack.c.b16 %v1428, %v1427
    %v1481 = vpack.c.b16 %v1430, %v1429
    %v1482 = vpack.c.b16 %v1432, %v1431
    %v1483 = vpack.c.b16 %v1434, %v1433
    %v1484 = vpack.c.b16 %v1436, %v1435
    %v1485 = vpack.c.b16 %v1438, %v1437
    %v1486 = vpack.c.b16 %v1440, %v1439
    %v1487 = vpack.c.b16 %v1442, %v1441
    %v1488 = vpack.c.b16 %v1444, %v1443
    %v1489 = vpack.c.b16 %v1446, %v1445
    %v1490 = vpack.c.b16 %v1448, %v1447
    %v1491 = vpack.c.b16 %v1450, %v1449
    %v1492 = vpack.c.b16 %v1452, %v1451
    %v1493 = vpack.c.b16 %v1454, %v1453
    %v1494 = vpack.c.b16 %v1456, %v1455
    %v1495 = vpack.c.b16 %v1458, %v1457
    %v1496 = vpack.c.b16 %v1460, %v1459
    %v1497 = vpack.c.b16 %v1462, %v1461
    %v1498 = vpack.c.b16 %v1464, %v1463
    %v1499 = vpack.c.b16 %v1466, %v1465
    %v1500 = vpack.c.b16 %v1468, %v1467
    %1533 = vmatprep.subr.bf16.mxu0 0
    %1534 = vmatpush1.bf16.msra.mxu0 %v1476
    %1535 = vmatprep.subr.bf16.mxu0 0
    %1536 = vmatpush1.bf16.msra.mxu0 %v1475
    %1537 = vmatprep.subr.bf16.mxu0 0
    %1538 = vmatpush1.bf16.msra.mxu0 %v1474
    %1539 = vmatprep.subr.bf16.mxu0 0
    %1540 = vmatpush1.bf16.msra.mxu0 %v1473
    %1541 = vmatprep.subr.bf16.mxu0 0
    %1542 = vmatpush1.bf16.msra.mxu0 %v1472
    %1543 = vmatprep.subr.bf16.mxu0 0
    %1544 = vmatpush1.bf16.msra.mxu0 %v1471
    %1545 = vmatprep.subr.bf16.mxu0 0
    %1546 = vmatpush1.bf16.msra.mxu0 %v1470
    %1547 = vmatprep.subr.bf16.mxu0 0
    %1548 = vmatpush1.bf16.msra.mxu0 %v1469
    %1549 = vmatprep.subr.bf16.mxu0 0
    %1550 = vmatpush2.bf16.msra.mxu0 %v1484
    %1551 = vmatprep.subr.bf16.mxu0 0
    %1552 = vmatpush2.bf16.msra.mxu0 %v1483
    %1553 = vmatprep.subr.bf16.mxu0 0
    %1554 = vmatpush2.bf16.msra.mxu0 %v1482
    %1555 = vmatprep.subr.bf16.mxu0 0
    %1556 = vmatpush2.bf16.msra.mxu0 %v1481
    %1557 = vmatprep.subr.bf16.mxu0 0
    %1558 = vmatpush2.bf16.msra.mxu0 %v1480
    %1559 = vmatprep.subr.bf16.mxu0 0
    %1560 = vmatpush2.bf16.msra.mxu0 %v1479
    %1561 = vmatprep.subr.bf16.mxu0 0
    %1562 = vmatpush2.bf16.msra.mxu0 %v1478
    %1563 = vmatprep.subr.bf16.mxu0 0
    %1564 = vmatpush2.bf16.msra.mxu0 %v1477
    %1565 = vmatprep.mubr.bf16.mxu0 %v1267
    %1566 = vmatmul.mubr.bf16.gmra.mxu0 %v1266
    %v1567 = vpop.f32.mrf.mxu0
    %v1568 = vadd.f32 %v1339, %v1567
    %v1569 = vpop.f32.mrf.mxu0
    %v1570 = vpop.f32.mrf.mxu0
    %v1571 = vadd.f32 %v1339, %v1570
    %v1572 = vpop.f32.mrf.mxu0
    %1573 = vdwg.mxu0
    %1574 = vmatprep.subr.bf16.mxu0 0
    %1575 = vmatpush1.bf16.msra.mxu0 %v1492
    %1576 = vmatprep.subr.bf16.mxu0 0
    %1577 = vmatpush1.bf16.msra.mxu0 %v1491
    %1578 = vmatprep.subr.bf16.mxu0 0
    %1579 = vmatpush1.bf16.msra.mxu0 %v1490
    %1580 = vmatprep.subr.bf16.mxu0 0
    %1581 = vmatpush1.bf16.msra.mxu0 %v1489
    %1582 = vmatprep.subr.bf16.mxu0 0
    %1583 = vmatpush1.bf16.msra.mxu0 %v1488
    %1584 = vmatprep.subr.bf16.mxu0 0
    %1585 = vmatpush1.bf16.msra.mxu0 %v1487
    %1586 = vmatprep.subr.bf16.mxu0 0
    %1587 = vmatpush1.bf16.msra.mxu0 %v1486
    %1588 = vmatprep.subr.bf16.mxu0 0
    %1589 = vmatpush1.bf16.msra.mxu0 %v1485
    %1590 = vmatprep.subr.bf16.mxu0 0
    %1591 = vmatpush2.bf16.msra.mxu0 %v1500
    %1592 = vmatprep.subr.bf16.mxu0 0
    %1593 = vmatpush2.bf16.msra.mxu0 %v1499
    %1594 = vmatprep.subr.bf16.mxu0 0
    %1595 = vmatpush2.bf16.msra.mxu0 %v1498
    %1596 = vmatprep.subr.bf16.mxu0 0
    %1597 = vmatpush2.bf16.msra.mxu0 %v1497
    %1598 = vmatprep.subr.bf16.mxu0 0
    %1599 = vmatpush2.bf16.msra.mxu0 %v1496
    %1600 = vmatprep.subr.bf16.mxu0 0
    %1601 = vmatpush2.bf16.msra.mxu0 %v1495
    %1602 = vmatprep.subr.bf16.mxu0 0
    %1603 = vmatpush2.bf16.msra.mxu0 %v1494
    %1604 = vmatprep.subr.bf16.mxu0 0
    %1605 = vmatpush2.bf16.msra.mxu0 %v1493
    %1606 = vmatprep.mubr.bf16.mxu0 %v1269
    %1607 = vmatmul.mubr.bf16.gmra.mxu0 %v1268
    %v1608 = vpop.f32.mrf.mxu0
    %v1609 = vadd.f32 %v1568, %v1608
    %v1610 = vpop.f32.mrf.mxu0
    %v1611 = vpop.f32.mrf.mxu0
    %v1612 = vadd.f32 %v1571, %v1611
    %v1613 = vpop.f32.mrf.mxu0
    %1614 = vdwg.mxu0
    %v1615 = vmax.f32 %v1609, 0.0
    %v1616 = vmax.f32 %v1612, 0.0
    %v1617 = vpack.c.bf16 %v1616, %v1615
    %v1618 = vld [vmem:[#allocation7] sm:$0xf]
    %v1619 = vld [vmem:[#allocation7 + $0x4] sm:$0xf]
    %v1620 = vld [vmem:[#allocation7 + $0x8] sm:$0xf]
    %v1621 = vld [vmem:[#allocation7 + $0xc] sm:$0xf]
    %v1622 = vld [vmem:[#allocation7 + $0x10] sm:$0xf]
    %v1623 = vld [vmem:[#allocation7 + $0x14] sm:$0xf]
    %v1624 = vld [vmem:[#allocation7 + $0x18] sm:$0xf]
    %v1625 = vld [vmem:[#allocation7 + $0x1c] sm:$0xf]
    %v1626 = vld [vmem:[#allocation7 + $0x20] sm:$0xf]
    %v1627 = vld [vmem:[#allocation7 + $0x24] sm:$0xf]
    %v1628 = vld [vmem:[#allocation7 + $0x28] sm:$0xf]
    %v1629 = vld [vmem:[#allocation7 + $0x2c] sm:$0xf]
    %v1630 = vld [vmem:[#allocation7 + $0x30] sm:$0xf]
    %v1631 = vld [vmem:[#allocation7 + $0x34] sm:$0xf]
    %v1632 = vld [vmem:[#allocation7 + $0x38] sm:$0xf]
    %v1633 = vld [vmem:[#allocation7 + $0x3c] sm:$0xf]
    %v1634 = vld [vmem:[%s8] sm:$0x1]
    %v1636 = vlaneseq
    %v1637 = vshrl.u32 %v1636, 7
    %v1638 = vsub.s32 0, %v1637
    %v1639 = vrot.slane %v1634, %v1638
    %v1657 = vunpack.c.l.b16 %v1618
    %v1658 = vunpack.c.l.b16 %v1619
    %v1659 = vunpack.c.l.b16 %v1620
    %v1660 = vunpack.c.l.b16 %v1621
    %v1661 = vunpack.c.l.b16 %v1622
    %v1662 = vunpack.c.l.b16 %v1623
    %v1663 = vunpack.c.l.b16 %v1624
    %v1664 = vunpack.c.l.b16 %v1625
    %v1665 = vunpack.c.l.b16 %v1626
    %v1666 = vunpack.c.l.b16 %v1627
    %v1667 = vunpack.c.l.b16 %v1628
    %v1668 = vunpack.c.l.b16 %v1629
    %v1669 = vunpack.c.l.b16 %v1630
    %v1670 = vunpack.c.l.b16 %v1631
    %v1671 = vunpack.c.l.b16 %v1632
    %v1672 = vunpack.c.l.b16 %v1633
    %v1673 = vpack.c.b16 %v1658, %v1657
    %v1674 = vpack.c.b16 %v1660, %v1659
    %v1675 = vpack.c.b16 %v1662, %v1661
    %v1676 = vpack.c.b16 %v1664, %v1663
    %v1677 = vpack.c.b16 %v1666, %v1665
    %v1678 = vpack.c.b16 %v1668, %v1667
    %v1679 = vpack.c.b16 %v1670, %v1669
    %v1680 = vpack.c.b16 %v1672, %v1671
    %1689 = vmatprep.subr.bf16.mxu0 0
    %1690 = vmatpush1.bf16.msra.mxu0 %v1680
    %1691 = vmatprep.subr.bf16.mxu0 0
    %1692 = vmatpush1.bf16.msra.mxu0 %v1679
    %1693 = vmatprep.subr.bf16.mxu0 0
    %1694 = vmatpush1.bf16.msra.mxu0 %v1678
    %1695 = vmatprep.subr.bf16.mxu0 0
    %1696 = vmatpush1.bf16.msra.mxu0 %v1677
    %1697 = vmatprep.subr.bf16.mxu0 0
    %1698 = vmatpush1.bf16.msra.mxu0 %v1676
    %1699 = vmatprep.subr.bf16.mxu0 0
    %1700 = vmatpush1.bf16.msra.mxu0 %v1675
    %1701 = vmatprep.subr.bf16.mxu0 0
    %1702 = vmatpush1.bf16.msra.mxu0 %v1674
    %1703 = vmatprep.subr.bf16.mxu0 0
    %1704 = vmatpush1.bf16.msra.mxu0 %v1673
    %1705 = vmatprep.subr.bf16.mxu0 0
    %1706 = vmatpush2.bf16.msra.mxu0 0
    %1707 = vmatprep.subr.bf16.mxu0 0
    %1708 = vmatpush2.bf16.msra.mxu0 0
    %1709 = vmatprep.subr.bf16.mxu0 0
    %1710 = vmatpush2.bf16.msra.mxu0 0
    %1711 = vmatprep.subr.bf16.mxu0 0
    %1712 = vmatpush2.bf16.msra.mxu0 0
    %1713 = vmatprep.subr.bf16.mxu0 0
    %1714 = vmatpush2.bf16.msra.mxu0 0
    %1715 = vmatprep.subr.bf16.mxu0 0
    %1716 = vmatpush2.bf16.msra.mxu0 0
    %1717 = vmatprep.subr.bf16.mxu0 0
    %1718 = vmatpush2.bf16.msra.mxu0 0
    %1719 = vmatprep.subr.bf16.mxu0 0
    %1720 = vmatpush2.bf16.msra.mxu0 0
    %1721 = vmatprep.mubr.bf16.mxu0 0
    %1722 = vmatmul.mubr.bf16.gmra.mxu0 %v1617
    %v1723 = vpop.f32.mrf.mxu0
    %v1724 = vadd.f32 %v1639, %v1723
    %v1725 = vpop.f32.mrf.mxu0
    %v1726 = vpop.f32.mrf.mxu0
    %v1727 = vadd.f32 %v1639, %v1726
    %v1728 = vpop.f32.mrf.mxu0
    %1729 = vdwg.mxu0
    %v1730 = vpack.c.bf16 %v1727, %v1724
    %v1732 = vunpack.c.l.b16 %v1730
    %v1733 = vunpack.c.h.b16 %v1730
    %v1734 = vpack.c.b16 %v1732, %v1732
    %v1735 = vpack.c.b16 %v1733, %v1733
    %1738 = vst [vmem:[%s9] sm:$0xf] %v1734
    %1739 = vst [vmem:[%s9 + $0x4] sm:$0xf] %v1735
    // Predicated region
    $region54: #{smallnet_forward.1} parent=1 // pred_check
      _
    $region55: #{smallnet_forward.1} parent=1 // pred_check_branch
      %1741 = sbr.rel (0) target = $region57
    $region56: #{smallnet_forward.1} parent=1 // pred_region
      _
    $region57: #{smallnet_forward.1} parent=1 // pred_fallthru
      _
    // Predicated region
    $region58: #{smallnet_forward.1} parent=1 // pred_check
      _
    $region59: #{smallnet_forward.1} parent=1 // pred_check_branch
      %1743 = sbr.rel (0) target = $region61
    $region60: #{smallnet_forward.1} parent=1 // pred_region
      _
    $region61: #{smallnet_forward.1} parent=1 // pred_fallthru
      _
    %1744 = vsyncpa [#allocation3], 1
    %1745 = vsyncpa [#allocation5], 1
    %1746 = vsyncpa [#allocation8], 1

</llo_original>
